<compile_context>
chip_gen: v7x
topology: tpu7x:2x2x1
jax: 0.10.0
libtpu: 0.0.40
codegen_flags: <defaults>
</compile_context>

<pallas_src>
import functools

import jax
import jax.numpy as jnp
from jax import lax
from jax.experimental import pallas as pl
from jax.experimental.pallas import tpu as pltpu


# ----------------------------------------------------------------------------
# Fused SPP kernel: one image (and one cout slab) per grid step.
# Everything (cv1 -> pool pyramid -> cv2) stays in VMEM.
# ----------------------------------------------------------------------------
def _spp_kernel(x_ref, w1_ref, b1_ref, w2_ref, b2_ref, m_ref, o_ref, *,
                width, hwp):
    x = x_ref[0]                               # (cin, HWp) bf16, flattened H*W

    # cv1: 1x1 conv (BN scale pre-folded into w1) + bias + SiLU (f32 accum).
    y = jnp.dot(w1_ref[...], x, preferred_element_type=jnp.float32)
    y = y + b1_ref[...]
    y = y * jax.nn.sigmoid(y)                  # (cmid, HWp) f32

    # Additive boundary masks, one (1, HWp) row per neighbour offset.
    # Row order: +1, -1, +2, -2, +W, -W, +2W, -2W  (0 inside image, -1e30 outside).
    mrows = [m_ref[k] for k in range(8)]

    def nb(p, d, k):
        # Neighbour value p[i + d] at every position i; forced to ~-inf where
        # that neighbour is outside the image (this also kills roll wrap-around
        # at the array ends and at row boundaries of the flattened layout).
        return pltpu.roll(p, (-d) % hwp, axis=1) + mrows[k]

    def pool5(p):
        # Separable 5x5 / stride-1 / 'same' (-inf padded) max pool.
        q = p
        for d, k in ((1, 0), (-1, 1), (2, 2), (-2, 3)):          # along W
            q = jnp.maximum(q, nb(p, d, k))
        r = q
        for d, k in ((width, 4), (-width, 5),
                     (2 * width, 6), (-2 * width, 7)):           # along H
            r = jnp.maximum(r, nb(q, d, k))
        return r

    # cv2 over concat([y, max5, max9, max13]) == sum of 4 dots, with the SPPF
    # cascade max9 = pool5(max5), max13 = pool5(max9).  Only finite, real-valued
    # activations ever enter the MXU (no sentinel columns, no halo columns).
    acc = jnp.dot(w2_ref[0], y, preferred_element_type=jnp.float32)
    p = y
    for t in range(1, 4):
        p = pool5(p)
        acc = acc + jnp.dot(w2_ref[t], p, preferred_element_type=jnp.float32)

    z = acc + b2_ref[...]
    o_ref[0] = (z * jax.nn.sigmoid(z)).astype(o_ref.dtype)


# ----------------------------------------------------------------------------
# Wrapper
# ----------------------------------------------------------------------------
def _shift_masks(h, w, hwp):
    """(8, 1, hwp) additive masks: 0 where neighbour at offset d is inside the
    image, -1e30 where it is not.  Offsets: +1,-1,+2,-2,+W,-W,+2W,-2W."""
    idx = jnp.arange(hwp, dtype=jnp.int32)
    row, col = idx // w, idx % w
    neg = jnp.float32(-1e30)

    def m(valid):
        return jnp.where(valid, jnp.float32(0.0), neg)

    masks = jnp.stack([
        m(col <= w - 2), m(col >= 1), m(col <= w - 3), m(col >= 2),   # +-1, +-2
        m(row <= h - 2), m(row >= 1), m(row <= h - 3), m(row >= 2),   # +-W, +-2W
    ])
    return masks.reshape(8, 1, hwp).astype(jnp.float32)


def spp_forward(x_nchw, params, *, cout_slabs=1):
    n, cin, h, w = x_nchw.shape
    w1, b1 = params["w1"], params["b1"]        # (cmid, cin) bf16, (cmid, 1) f32
    w2, b2 = params["w2"], params["b2"]        # (4, cout, cmid) bf16, (cout, 1) f32
    cmid, cout = w1.shape[0], w2.shape[1]

    hw = h * w
    hwp = ((hw + 127) // 128) * 128            # lane-dense tail pad (<=127 extra)

    # Contiguous-merge reshape (free) + bf16 staging (in a real pipeline x would
    # already arrive in bf16).  No spatial padding pass anymore.
    xf = x_nchw.reshape(n, cin, hw).astype(jnp.bfloat16)
    if hwp != hw:
        xf = jnp.pad(xf, ((0, 0), (0, 0), (0, hwp - hw)))

    masks = _shift_masks(h, w, hwp)            # (8, 1, hwp) f32

    # Optional cout split: >=2 balanced parallel steps for v7x's two TensorCores
    # even at batch 1.  Each slab recomputes cv1 + pooling, so keep slabs=1 on
    # single-TC chips unless the batch alone cannot fill the grid.
    if cout_slabs < 1 or cout % cout_slabs or (cout // cout_slabs) % 8:
        cout_slabs = 1
    cs = cout // cout_slabs

    # Per-grid-step VMEM footprint (double-buffered ins/outs + f32 temporaries).
    need = (2 * (cin * hwp * 2) + 2 * (cs * hwp * 2)
            + 2 * ((cmid * cin + 4 * cout * cmid) * 2 + (cmid + cout) * 4
                   + 8 * hwp * 4)
            + (3 * cmid + cs) * hwp * 4 + (4 << 20))
    vmem_limit = int(min(64 << 20, max(need, 16 << 20)))
    # TODO(synk): for very large cmid*H*W (v7x 64 MiB VMEM) add a spatial
    #             row-block grid axis with a 2-row halo instead of whole images.

    out = pl.pallas_call(
        functools.partial(_spp_kernel, width=w, hwp=hwp),
        out_shape=jax.ShapeDtypeStruct((n, cout, hwp), jnp.bfloat16),
        grid=(n, cout_slabs),
        in_specs=[
            pl.BlockSpec((1, cin, hwp), lambda i, j: (i, 0, 0)),
            pl.BlockSpec((cmid, cin), lambda i, j: (0, 0)),
            pl.BlockSpec((cmid, 1), lambda i, j: (0, 0)),
            pl.BlockSpec((4, cs, cmid), lambda i, j: (0, j, 0)),
            pl.BlockSpec((cs, 1), lambda i, j: (j, 0)),
            pl.BlockSpec((8, 1, hwp), lambda i, j: (0, 0, 0)),
        ],
        out_specs=pl.BlockSpec((1, cs, hwp), lambda i, j: (i, j, 0)),
        compiler_params=pltpu.CompilerParams(
            dimension_semantics=("parallel", "parallel"),
            vmem_limit_bytes=vmem_limit),
    )(xf, w1, b1, w2, b2, masks)

    if hwp != hw:
        out = out[:, :, :hw]
    return out.reshape(n, cout, h, w)          # NCHW, bf16


# ----------------------------------------------------------------------------
# Synthetic params (deterministic) + inference-mode BN folding
# ----------------------------------------------------------------------------
def _fold_bn(gamma, beta, mean, var, eps=1e-5):
    scale = gamma / jnp.sqrt(var + eps)
    bias = beta - mean * scale
    return scale, bias


def init_spp_params(key, cin, cout):
    cmid = cin // 2
    k1, k2, kg1, kb1, km1, kv1, kg2, kb2, km2, kv2 = jax.random.split(key, 10)
    w1 = jax.random.normal(k1, (cmid, cin), jnp.float32) * 0.1          # 1x1 conv
    w2 = jax.random.normal(k2, (cout, 4 * cmid), jnp.float32) * 0.1     # 1x1 conv
    g1 = jax.random.uniform(kg1, (cmid,), jnp.float32, 0.5, 1.5)
    be1 = jax.random.normal(kb1, (cmid,), jnp.float32) * 0.1
    m1 = jax.random.normal(km1, (cmid,), jnp.float32) * 0.1
    v1 = jax.random.uniform(kv1, (cmid,), jnp.float32, 0.5, 1.5)
    g2 = jax.random.uniform(kg2, (cout,), jnp.float32, 0.5, 1.5)
    be2 = jax.random.normal(kb2, (cout,), jnp.float32) * 0.1
    m2 = jax.random.normal(km2, (cout,), jnp.float32) * 0.1
    v2 = jax.random.uniform(kv2, (cout,), jnp.float32, 0.5, 1.5)

    s1, b1 = _fold_bn(g1, be1, m1, v1)
    s2, b2 = _fold_bn(g2, be2, m2, v2)

    raw = dict(w1=w1, w2=w2, s1=s1, b1=b1, s2=s2, b2=b2)   # for the reference

    # Kernel-side params: BN scale folded into conv weights (bf16 staging);
    # cv2 weight split into the 4 concat groups in PyTorch order [y,m5,m9,m13].
    kparams = {
        "w1": (s1[:, None] * w1).astype(jnp.bfloat16),                       # (cmid, cin)
        "b1": b1[:, None].astype(jnp.float32),                               # (cmid, 1)
        "w2": (s2[:, None] * w2).reshape(cout, 4, cmid)
                                .transpose(1, 0, 2).astype(jnp.bfloat16),    # (4, cout, cmid)
        "b2": b2[:, None].astype(jnp.float32),                               # (cout, 1)
    }
    return kparams, raw


# ----------------------------------------------------------------------------
# Pure-JAX reference (independent: no cascade, no folding, no flattening tricks)
# ----------------------------------------------------------------------------
def spp_ref(x_nchw, raw):
    def conv_bn_silu(x, wmat, scale, bias):      # 1x1 conv + BN + SiLU, NCHW
        y = jnp.einsum('oc,nchw->nohw', wmat, x)
        y = y * scale[None, :, None, None] + bias[None, :, None, None]
        return y * jax.nn.sigmoid(y)

    y = conv_bn_silu(x_nchw, raw["w1"], raw["s1"], raw["b1"])
    pools = [y]
    for k in (5, 9, 13):
        r = k // 2
        pools.append(lax.reduce_window(
            y, -jnp.inf, lax.max,
            (1, 1, k, k), (1, 1, 1, 1),
            [(0, 0), (0, 0), (r, r), (r, r)]))
    cat = jnp.concatenate(pools, axis=1)
    return conv_bn_silu(cat, raw["w2"], raw["s2"], raw["b2"])


# ----------------------------------------------------------------------------
if __name__ == "__main__":
    key = jax.random.PRNGKey(0)
    kx, kp = jax.random.split(key)

    N, Cin, H, W = 2, 16, 16, 16
    Cout = 16                                    # middle_channel = Cin // 2 = 8

    x = jax.random.normal(kx, (N, Cin, H, W), jnp.float32)   # PyTorch-style NCHW
    kparams, raw = init_spp_params(kp, Cin, Cout)
    ref = spp_ref(x, raw)

    # default path: grid parallel over batch only
    fwd = jax.jit(functools.partial(spp_forward, params=kparams))
    out = jax.block_until_ready(fwd(x))
    assert out.shape == (N, Cout, H, W), out.shape
    err = float(jnp.max(jnp.abs(out.astype(jnp.float32) - ref)))
    assert err < 5e-2, f"max abs err {err}"      # bf16 staging + bf16 output

    # also exercise the cout-slab split (feeds both v7x TensorCores at small N)
    fwd2 = jax.jit(functools.partial(spp_forward, params=kparams, cout_slabs=2))
    out2 = jax.block_until_ready(fwd2(x))
    err2 = float(jnp.max(jnp.abs(out2.astype(jnp.float32) - ref)))
    assert err2 < 5e-2, f"max abs err (cout_slabs=2) {err2}"

    print("KERNEL_OK")
</pallas_src>

<mosaic_0001>
module attributes {stable_mosaic.version = 11 : i64} {
  func.func @_spp_kernel(%arg0: i32, %arg1: i32, %arg2: memref<1x16x256xbf16, #tpu.memory_space<vmem>>, %arg3: memref<8x16xbf16, #tpu.memory_space<vmem>>, %arg4: memref<8x1xf32, #tpu.memory_space<vmem>>, %arg5: memref<4x16x8xbf16, #tpu.memory_space<vmem>>, %arg6: memref<16x1xf32, #tpu.memory_space<vmem>>, %arg7: memref<8x1x256xf32, #tpu.memory_space<vmem>>, %arg8: memref<1x16x256xbf16, #tpu.memory_space<vmem>>) attributes {dimension_semantics = [#tpu.dimension_semantics<parallel>, #tpu.dimension_semantics<parallel>], iteration_bounds = array<i64: 2, 1>, scalar_prefetch = 0 : i64, scratch_operands = 0 : i64, tpu.core_type = #tpu.core_type<tc>, window_params = [{transform_indices = @transform_0, window_bounds = array<i64: 1, 16, 256>}, {pipeline_mode = #tpu.pipeline_mode<synchronous>, transform_indices = @transform_1, window_bounds = array<i64: 8, 16>}, {pipeline_mode = #tpu.pipeline_mode<synchronous>, transform_indices = @transform_2, window_bounds = array<i64: 8, 1>}, {transform_indices = @transform_3, window_bounds = array<i64: 4, 16, 8>}, {transform_indices = @transform_4, window_bounds = array<i64: 16, 1>}, {pipeline_mode = #tpu.pipeline_mode<synchronous>, transform_indices = @transform_5, window_bounds = array<i64: 8, 1, 256>}, {transform_indices = @transform_6, window_bounds = array<i64: 1, 16, 256>}]} {
    %c0 = arith.constant 0 : index
    %c0_0 = arith.constant 0 : index
    %c0_1 = arith.constant 0 : index
    %0 = vector.load %arg2[%c0, %c0_0, %c0_1] : memref<1x16x256xbf16, #tpu.memory_space<vmem>>, vector<1x16x256xbf16>
    %1 = vector.shape_cast %0 : vector<1x16x256xbf16> to vector<16x256xbf16>
    %c0_2 = arith.constant 0 : index
    %c0_3 = arith.constant 0 : index
    %2 = vector.load %arg3[%c0_2, %c0_3] : memref<8x16xbf16, #tpu.memory_space<vmem>>, vector<8x16xbf16>
    %cst = arith.constant dense<0.000000e+00> : vector<8x256xf32>
    %3 = tpu.matmul %2, %1, %cst {dimension_numbers = #tpu.dot_dimension_numbers<[1], [0], [0], [1], [0, 0, 1, 1], [], []>} : vector<8x16xbf16>, vector<16x256xbf16>, vector<8x256xf32> -> vector<8x256xf32>
    %c0_4 = arith.constant 0 : index
    %c0_5 = arith.constant 0 : index
    %4 = vector.load %arg4[%c0_4, %c0_5] : memref<8x1xf32, #tpu.memory_space<vmem>>, vector<8x1xf32>
    %5 = vector.broadcast %4 : vector<8x1xf32> to vector<8x256xf32>
    %6 = arith.addf %3, %5 : vector<8x256xf32>
    %7 = arith.negf %6 : vector<8x256xf32>
    %8 = math.exp %7 : vector<8x256xf32>
    %cst_6 = arith.constant 1.000000e+00 : f32
    %9 = vector.broadcast %cst_6 : f32 to vector<8x256xf32>
    %10 = arith.addf %9, %8 : vector<8x256xf32>
    %11 = arith.divf %9, %10 : vector<8x256xf32>
    %12 = arith.mulf %6, %11 : vector<8x256xf32>
    %c0_7 = arith.constant 0 : index
    %c0_8 = arith.constant 0 : index
    %c0_9 = arith.constant 0 : index
    %13 = vector.load %arg7[%c0_7, %c0_8, %c0_9] : memref<8x1x256xf32, #tpu.memory_space<vmem>>, vector<1x1x256xf32>
    %14 = vector.shape_cast %13 : vector<1x1x256xf32> to vector<1x256xf32>
    %c1 = arith.constant 1 : index
    %c0_10 = arith.constant 0 : index
    %c0_11 = arith.constant 0 : index
    %15 = vector.load %arg7[%c1, %c0_10, %c0_11] : memref<8x1x256xf32, #tpu.memory_space<vmem>>, vector<1x1x256xf32>
    %16 = vector.shape_cast %15 : vector<1x1x256xf32> to vector<1x256xf32>
    %c2 = arith.constant 2 : index
    %c0_12 = arith.constant 0 : index
    %c0_13 = arith.constant 0 : index
    %17 = vector.load %arg7[%c2, %c0_12, %c0_13] : memref<8x1x256xf32, #tpu.memory_space<vmem>>, vector<1x1x256xf32>
    %18 = vector.shape_cast %17 : vector<1x1x256xf32> to vector<1x256xf32>
    %c3 = arith.constant 3 : index
    %c0_14 = arith.constant 0 : index
    %c0_15 = arith.constant 0 : index
    %19 = vector.load %arg7[%c3, %c0_14, %c0_15] : memref<8x1x256xf32, #tpu.memory_space<vmem>>, vector<1x1x256xf32>
    %20 = vector.shape_cast %19 : vector<1x1x256xf32> to vector<1x256xf32>
    %c4 = arith.constant 4 : index
    %c0_16 = arith.constant 0 : index
    %c0_17 = arith.constant 0 : index
    %21 = vector.load %arg7[%c4, %c0_16, %c0_17] : memref<8x1x256xf32, #tpu.memory_space<vmem>>, vector<1x1x256xf32>
    %22 = vector.shape_cast %21 : vector<1x1x256xf32> to vector<1x256xf32>
    %c5 = arith.constant 5 : index
    %c0_18 = arith.constant 0 : index
    %c0_19 = arith.constant 0 : index
    %23 = vector.load %arg7[%c5, %c0_18, %c0_19] : memref<8x1x256xf32, #tpu.memory_space<vmem>>, vector<1x1x256xf32>
    %24 = vector.shape_cast %23 : vector<1x1x256xf32> to vector<1x256xf32>
    %c6 = arith.constant 6 : index
    %c0_20 = arith.constant 0 : index
    %c0_21 = arith.constant 0 : index
    %25 = vector.load %arg7[%c6, %c0_20, %c0_21] : memref<8x1x256xf32, #tpu.memory_space<vmem>>, vector<1x1x256xf32>
    %26 = vector.shape_cast %25 : vector<1x1x256xf32> to vector<1x256xf32>
    %c7 = arith.constant 7 : index
    %c0_22 = arith.constant 0 : index
    %c0_23 = arith.constant 0 : index
    %27 = vector.load %arg7[%c7, %c0_22, %c0_23] : memref<8x1x256xf32, #tpu.memory_space<vmem>>, vector<1x1x256xf32>
    %28 = vector.shape_cast %27 : vector<1x1x256xf32> to vector<1x256xf32>
    %c0_24 = arith.constant 0 : index
    %c0_25 = arith.constant 0 : index
    %c0_26 = arith.constant 0 : index
    %29 = vector.load %arg5[%c0_24, %c0_25, %c0_26] : memref<4x16x8xbf16, #tpu.memory_space<vmem>>, vector<1x16x8xbf16>
    %30 = vector.shape_cast %29 : vector<1x16x8xbf16> to vector<16x8xbf16>
    %cst_27 = arith.constant dense<0.000000e+00> : vector<16x256xf32>
    %31 = tpu.matmul %30, %12, %cst_27 {dimension_numbers = #tpu.dot_dimension_numbers<[1], [0], [0], [1], [0, 0, 1, 1], [], []>} : vector<16x8xbf16>, vector<8x256xf32>, vector<16x256xf32> -> vector<16x256xf32>
    %c255_i32 = arith.constant 255 : i32
    %32 = tpu.dynamic_rotate %12 by %c255_i32 dim 1 : vector<8x256xf32>, i32 -> vector<8x256xf32>
    %33 = vector.broadcast %14 : vector<1x256xf32> to vector<8x256xf32>
    %34 = arith.addf %32, %33 : vector<8x256xf32>
    %35 = arith.maximumf %12, %34 : vector<8x256xf32>
    %c1_i32 = arith.constant 1 : i32
    %36 = tpu.dynamic_rotate %12 by %c1_i32 dim 1 : vector<8x256xf32>, i32 -> vector<8x256xf32>
    %37 = vector.broadcast %16 : vector<1x256xf32> to vector<8x256xf32>
    %38 = arith.addf %36, %37 : vector<8x256xf32>
    %39 = arith.maximumf %35, %38 : vector<8x256xf32>
    %c254_i32 = arith.constant 254 : i32
    %40 = tpu.dynamic_rotate %12 by %c254_i32 dim 1 : vector<8x256xf32>, i32 -> vector<8x256xf32>
    %41 = vector.broadcast %18 : vector<1x256xf32> to vector<8x256xf32>
    %42 = arith.addf %40, %41 : vector<8x256xf32>
    %43 = arith.maximumf %39, %42 : vector<8x256xf32>
    %c2_i32 = arith.constant 2 : i32
    %44 = tpu.dynamic_rotate %12 by %c2_i32 dim 1 : vector<8x256xf32>, i32 -> vector<8x256xf32>
    %45 = vector.broadcast %20 : vector<1x256xf32> to vector<8x256xf32>
    %46 = arith.addf %44, %45 : vector<8x256xf32>
    %47 = arith.maximumf %43, %46 : vector<8x256xf32>
    %c240_i32 = arith.constant 240 : i32
    %48 = tpu.dynamic_rotate %47 by %c240_i32 dim 1 : vector<8x256xf32>, i32 -> vector<8x256xf32>
    %49 = vector.broadcast %22 : vector<1x256xf32> to vector<8x256xf32>
    %50 = arith.addf %48, %49 : vector<8x256xf32>
    %51 = arith.maximumf %47, %50 : vector<8x256xf32>
    %c16_i32 = arith.constant 16 : i32
    %52 = tpu.dynamic_rotate %47 by %c16_i32 dim 1 : vector<8x256xf32>, i32 -> vector<8x256xf32>
    %53 = vector.broadcast %24 : vector<1x256xf32> to vector<8x256xf32>
    %54 = arith.addf %52, %53 : vector<8x256xf32>
    %55 = arith.maximumf %51, %54 : vector<8x256xf32>
    %c224_i32 = arith.constant 224 : i32
    %56 = tpu.dynamic_rotate %47 by %c224_i32 dim 1 : vector<8x256xf32>, i32 -> vector<8x256xf32>
    %57 = vector.broadcast %26 : vector<1x256xf32> to vector<8x256xf32>
    %58 = arith.addf %56, %57 : vector<8x256xf32>
    %59 = arith.maximumf %55, %58 : vector<8x256xf32>
    %c32_i32 = arith.constant 32 : i32
    %60 = tpu.dynamic_rotate %47 by %c32_i32 dim 1 : vector<8x256xf32>, i32 -> vector<8x256xf32>
    %61 = vector.broadcast %28 : vector<1x256xf32> to vector<8x256xf32>
    %62 = arith.addf %60, %61 : vector<8x256xf32>
    %63 = arith.maximumf %59, %62 : vector<8x256xf32>
    %c1_28 = arith.constant 1 : index
    %c0_29 = arith.constant 0 : index
    %c0_30 = arith.constant 0 : index
    %64 = vector.load %arg5[%c1_28, %c0_29, %c0_30] : memref<4x16x8xbf16, #tpu.memory_space<vmem>>, vector<1x16x8xbf16>
    %65 = vector.shape_cast %64 : vector<1x16x8xbf16> to vector<16x8xbf16>
    %cst_31 = arith.constant dense<0.000000e+00> : vector<16x256xf32>
    %66 = tpu.matmul %65, %63, %cst_31 {dimension_numbers = #tpu.dot_dimension_numbers<[1], [0], [0], [1], [0, 0, 1, 1], [], []>} : vector<16x8xbf16>, vector<8x256xf32>, vector<16x256xf32> -> vector<16x256xf32>
    %67 = arith.addf %31, %66 : vector<16x256xf32>
    %c255_i32_32 = arith.constant 255 : i32
    %68 = tpu.dynamic_rotate %63 by %c255_i32_32 dim 1 : vector<8x256xf32>, i32 -> vector<8x256xf32>
    %69 = vector.broadcast %14 : vector<1x256xf32> to vector<8x256xf32>
    %70 = arith.addf %68, %69 : vector<8x256xf32>
    %71 = arith.maximumf %63, %70 : vector<8x256xf32>
    %c1_i32_33 = arith.constant 1 : i32
    %72 = tpu.dynamic_rotate %63 by %c1_i32_33 dim 1 : vector<8x256xf32>, i32 -> vector<8x256xf32>
    %73 = vector.broadcast %16 : vector<1x256xf32> to vector<8x256xf32>
    %74 = arith.addf %72, %73 : vector<8x256xf32>
    %75 = arith.maximumf %71, %74 : vector<8x256xf32>
    %c254_i32_34 = arith.constant 254 : i32
    %76 = tpu.dynamic_rotate %63 by %c254_i32_34 dim 1 : vector<8x256xf32>, i32 -> vector<8x256xf32>
    %77 = vector.broadcast %18 : vector<1x256xf32> to vector<8x256xf32>
    %78 = arith.addf %76, %77 : vector<8x256xf32>
    %79 = arith.maximumf %75, %78 : vector<8x256xf32>
    %c2_i32_35 = arith.constant 2 : i32
    %80 = tpu.dynamic_rotate %63 by %c2_i32_35 dim 1 : vector<8x256xf32>, i32 -> vector<8x256xf32>
    %81 = vector.broadcast %20 : vector<1x256xf32> to vector<8x256xf32>
    %82 = arith.addf %80, %81 : vector<8x256xf32>
    %83 = arith.maximumf %79, %82 : vector<8x256xf32>
    %c240_i32_36 = arith.constant 240 : i32
    %84 = tpu.dynamic_rotate %83 by %c240_i32_36 dim 1 : vector<8x256xf32>, i32 -> vector<8x256xf32>
    %85 = vector.broadcast %22 : vector<1x256xf32> to vector<8x256xf32>
    %86 = arith.addf %84, %85 : vector<8x256xf32>
    %87 = arith.maximumf %83, %86 : vector<8x256xf32>
    %c16_i32_37 = arith.constant 16 : i32
    %88 = tpu.dynamic_rotate %83 by %c16_i32_37 dim 1 : vector<8x256xf32>, i32 -> vector<8x256xf32>
    %89 = vector.broadcast %24 : vector<1x256xf32> to vector<8x256xf32>
    %90 = arith.addf %88, %89 : vector<8x256xf32>
    %91 = arith.maximumf %87, %90 : vector<8x256xf32>
    %c224_i32_38 = arith.constant 224 : i32
    %92 = tpu.dynamic_rotate %83 by %c224_i32_38 dim 1 : vector<8x256xf32>, i32 -> vector<8x256xf32>
    %93 = vector.broadcast %26 : vector<1x256xf32> to vector<8x256xf32>
    %94 = arith.addf %92, %93 : vector<8x256xf32>
    %95 = arith.maximumf %91, %94 : vector<8x256xf32>
    %c32_i32_39 = arith.constant 32 : i32
    %96 = tpu.dynamic_rotate %83 by %c32_i32_39 dim 1 : vector<8x256xf32>, i32 -> vector<8x256xf32>
    %97 = vector.broadcast %28 : vector<1x256xf32> to vector<8x256xf32>
    %98 = arith.addf %96, %97 : vector<8x256xf32>
    %99 = arith.maximumf %95, %98 : vector<8x256xf32>
    %c2_40 = arith.constant 2 : index
    %c0_41 = arith.constant 0 : index
    %c0_42 = arith.constant 0 : index
    %100 = vector.load %arg5[%c2_40, %c0_41, %c0_42] : memref<4x16x8xbf16, #tpu.memory_space<vmem>>, vector<1x16x8xbf16>
    %101 = vector.shape_cast %100 : vector<1x16x8xbf16> to vector<16x8xbf16>
    %cst_43 = arith.constant dense<0.000000e+00> : vector<16x256xf32>
    %102 = tpu.matmul %101, %99, %cst_43 {dimension_numbers = #tpu.dot_dimension_numbers<[1], [0], [0], [1], [0, 0, 1, 1], [], []>} : vector<16x8xbf16>, vector<8x256xf32>, vector<16x256xf32> -> vector<16x256xf32>
    %103 = arith.addf %67, %102 : vector<16x256xf32>
    %c255_i32_44 = arith.constant 255 : i32
    %104 = tpu.dynamic_rotate %99 by %c255_i32_44 dim 1 : vector<8x256xf32>, i32 -> vector<8x256xf32>
    %105 = vector.broadcast %14 : vector<1x256xf32> to vector<8x256xf32>
    %106 = arith.addf %104, %105 : vector<8x256xf32>
    %107 = arith.maximumf %99, %106 : vector<8x256xf32>
    %c1_i32_45 = arith.constant 1 : i32
    %108 = tpu.dynamic_rotate %99 by %c1_i32_45 dim 1 : vector<8x256xf32>, i32 -> vector<8x256xf32>
    %109 = vector.broadcast %16 : vector<1x256xf32> to vector<8x256xf32>
    %110 = arith.addf %108, %109 : vector<8x256xf32>
    %111 = arith.maximumf %107, %110 : vector<8x256xf32>
    %c254_i32_46 = arith.constant 254 : i32
    %112 = tpu.dynamic_rotate %99 by %c254_i32_46 dim 1 : vector<8x256xf32>, i32 -> vector<8x256xf32>
    %113 = vector.broadcast %18 : vector<1x256xf32> to vector<8x256xf32>
    %114 = arith.addf %112, %113 : vector<8x256xf32>
    %115 = arith.maximumf %111, %114 : vector<8x256xf32>
    %c2_i32_47 = arith.constant 2 : i32
    %116 = tpu.dynamic_rotate %99 by %c2_i32_47 dim 1 : vector<8x256xf32>, i32 -> vector<8x256xf32>
    %117 = vector.broadcast %20 : vector<1x256xf32> to vector<8x256xf32>
    %118 = arith.addf %116, %117 : vector<8x256xf32>
    %119 = arith.maximumf %115, %118 : vector<8x256xf32>
    %c240_i32_48 = arith.constant 240 : i32
    %120 = tpu.dynamic_rotate %119 by %c240_i32_48 dim 1 : vector<8x256xf32>, i32 -> vector<8x256xf32>
    %121 = vector.broadcast %22 : vector<1x256xf32> to vector<8x256xf32>
    %122 = arith.addf %120, %121 : vector<8x256xf32>
    %123 = arith.maximumf %119, %122 : vector<8x256xf32>
    %c16_i32_49 = arith.constant 16 : i32
    %124 = tpu.dynamic_rotate %119 by %c16_i32_49 dim 1 : vector<8x256xf32>, i32 -> vector<8x256xf32>
    %125 = vector.broadcast %24 : vector<1x256xf32> to vector<8x256xf32>
    %126 = arith.addf %124, %125 : vector<8x256xf32>
    %127 = arith.maximumf %123, %126 : vector<8x256xf32>
    %c224_i32_50 = arith.constant 224 : i32
    %128 = tpu.dynamic_rotate %119 by %c224_i32_50 dim 1 : vector<8x256xf32>, i32 -> vector<8x256xf32>
    %129 = vector.broadcast %26 : vector<1x256xf32> to vector<8x256xf32>
    %130 = arith.addf %128, %129 : vector<8x256xf32>
    %131 = arith.maximumf %127, %130 : vector<8x256xf32>
    %c32_i32_51 = arith.constant 32 : i32
    %132 = tpu.dynamic_rotate %119 by %c32_i32_51 dim 1 : vector<8x256xf32>, i32 -> vector<8x256xf32>
    %133 = vector.broadcast %28 : vector<1x256xf32> to vector<8x256xf32>
    %134 = arith.addf %132, %133 : vector<8x256xf32>
    %135 = arith.maximumf %131, %134 : vector<8x256xf32>
    %c3_52 = arith.constant 3 : index
    %c0_53 = arith.constant 0 : index
    %c0_54 = arith.constant 0 : index
    %136 = vector.load %arg5[%c3_52, %c0_53, %c0_54] : memref<4x16x8xbf16, #tpu.memory_space<vmem>>, vector<1x16x8xbf16>
    %137 = vector.shape_cast %136 : vector<1x16x8xbf16> to vector<16x8xbf16>
    %cst_55 = arith.constant dense<0.000000e+00> : vector<16x256xf32>
    %138 = tpu.matmul %137, %135, %cst_55 {dimension_numbers = #tpu.dot_dimension_numbers<[1], [0], [0], [1], [0, 0, 1, 1], [], []>} : vector<16x8xbf16>, vector<8x256xf32>, vector<16x256xf32> -> vector<16x256xf32>
    %139 = arith.addf %103, %138 : vector<16x256xf32>
    %c0_56 = arith.constant 0 : index
    %c0_57 = arith.constant 0 : index
    %140 = vector.load %arg6[%c0_56, %c0_57] : memref<16x1xf32, #tpu.memory_space<vmem>>, vector<16x1xf32>
    %141 = vector.broadcast %140 : vector<16x1xf32> to vector<16x256xf32>
    %142 = arith.addf %139, %141 : vector<16x256xf32>
    %143 = arith.negf %142 : vector<16x256xf32>
    %144 = math.exp %143 : vector<16x256xf32>
    %cst_58 = arith.constant 1.000000e+00 : f32
    %145 = vector.broadcast %cst_58 : f32 to vector<16x256xf32>
    %146 = arith.addf %145, %144 : vector<16x256xf32>
    %147 = arith.divf %145, %146 : vector<16x256xf32>
    %148 = arith.mulf %142, %147 : vector<16x256xf32>
    %149 = arith.truncf %148 : vector<16x256xf32> to vector<16x256xbf16>
    %c0_59 = arith.constant 0 : index
    %c0_60 = arith.constant 0 : index
    %c0_61 = arith.constant 0 : index
    %150 = vector.load %arg8[%c0_59, %c0_60, %c0_61] : memref<1x16x256xbf16, #tpu.memory_space<vmem>>, vector<1x16x256xbf16>
    %151 = vector.shape_cast %150 : vector<1x16x256xbf16> to vector<16x256xbf16>
    %152 = vector.shape_cast %149 : vector<16x256xbf16> to vector<1x16x256xbf16>
    tpu.vector_store %arg8[%c0_59, %c0_60, %c0_61], %152 {strides = array<i32>} : memref<1x16x256xbf16, #tpu.memory_space<vmem>>, vector<1x16x256xbf16>,
    return
  }
  func.func @transform_0(%arg0: i32, %arg1: i32) -> (i32, i32, i32) {
    %c0_i32 = arith.constant 0 : i32
    %c0_i32_0 = arith.constant 0 : i32
    %c0_i32_1 = arith.constant 0 : i32
    return %arg0, %c0_i32, %c0_i32_0 : i32, i32, i32
  }
  func.func @transform_1(%arg0: i32, %arg1: i32) -> (i32, i32) {
    %c0_i32 = arith.constant 0 : i32
    %c0_i32_0 = arith.constant 0 : i32
    %c0_i32_1 = arith.constant 0 : i32
    return %c0_i32, %c0_i32_0 : i32, i32
  }
  func.func @transform_2(%arg0: i32, %arg1: i32) -> (i32, i32) {
    %c0_i32 = arith.constant 0 : i32
    %c0_i32_0 = arith.constant 0 : i32
    %c0_i32_1 = arith.constant 0 : i32
    return %c0_i32, %c0_i32_0 : i32, i32
  }
  func.func @transform_3(%arg0: i32, %arg1: i32) -> (i32, i32, i32) {
    %c0_i32 = arith.constant 0 : i32
    %c0_i32_0 = arith.constant 0 : i32
    %c0_i32_1 = arith.constant 0 : i32
    return %c0_i32, %arg1, %c0_i32_0 : i32, i32, i32
  }
  func.func @transform_4(%arg0: i32, %arg1: i32) -> (i32, i32) {
    %c0_i32 = arith.constant 0 : i32
    %c0_i32_0 = arith.constant 0 : i32
    return %arg1, %c0_i32 : i32, i32
  }
  func.func @transform_5(%arg0: i32, %arg1: i32) -> (i32, i32, i32) {
    %c0_i32 = arith.constant 0 : i32
    %c0_i32_0 = arith.constant 0 : i32
    %c0_i32_1 = arith.constant 0 : i32
    %c0_i32_2 = arith.constant 0 : i32
    return %c0_i32, %c0_i32_0, %c0_i32_1 : i32, i32, i32
  }
  func.func @transform_6(%arg0: i32, %arg1: i32) -> (i32, i32, i32) {
    %c0_i32 = arith.constant 0 : i32
    %c0_i32_0 = arith.constant 0 : i32
    return %arg0, %arg1, %c0_i32 : i32, i32, i32
  }
}

</mosaic_0001>

<llo_original>
// kernel: spp_forward.1
$region0: #{spp_forward.1}
  #allocation0 [shape = 'u32[]', space=smem, size = 0x4, offset = 0x4, fixed_abs, tag = 'smem constant byte address 0x4 - core index']
  #allocation1 [shape = 'u32[144,128]{1,0:T(1,128)}', space=vmem, size = 0x12000, scoped, tag = 'internal scratch']
  %s0 = inlined_call_operand.vmem [shape: bf16[2,16,256], index: 0, kind: input, shape index: {}]
  %s1 = inlined_call_operand.vmem [shape: bf16[8,16], index: 1, kind: input, shape index: {}]
  %s2 = inlined_call_operand.vmem [shape: f32[8,1], index: 2, kind: input, shape index: {}]
  %s3 = inlined_call_operand.vmem [shape: bf16[4,16,8], index: 3, kind: input, shape index: {}]
  %s4 = inlined_call_operand.vmem [shape: f32[16,1], index: 4, kind: input, shape index: {}]
  %s5 = inlined_call_operand.vmem [shape: f32[8,1,256], index: 5, kind: input, shape index: {}]
  %s6 = inlined_call_operand.vmem [shape: bf16[2,16,256], index: 6, kind: output, shape index: {}]
  %s7 = sld [smem:[#allocation0]]
  $region57: #{spp_forward.1} parent=0
    _
  %s9 = ssub.s32 1, %s7
  %s10 = scalar_select 0, %s9, %s7
  loop: start=0, step=1, limit=4
  $region2: #{spp_forward.1} parent=0 // loop_pre_header
    _
  $region3: #{spp_forward.1} parent=0 // loop_header
    %s12 = sphi 0, %s16
    %p13 = scmp.ge.s32.totalorder %s12, 4
    %s19 = sphi 0, %s31
    %s20 = sphi 0, %s27
    %s21 = sphi 0, %s19
    %s22 = sphi 0, %s20
    %s23 = sphi 0, %s21
    %s24 = sphi 0, %s22
    %s34 = sphi 0, %s36
    %s37 = sphi 0, %s34
    %s38 = sphi 0, %s37
    %s54 = sphi 0, %s38
    %s58 = sphi 0, %s58
    %s60 = sphi 0, %s58
    %s61 = sphi 0, %s60
    %s75 = sphi 0, %s61
    %s79 = sphi 0, %s79
    %s81 = sphi 0, %s79
    %s82 = sphi 0, %s81
    %s96 = sphi 0, %s82
    %s102 = sphi 0, %s104
    %s105 = sphi 0, %s102
    %s106 = sphi 0, %s105
    %s122 = sphi 0, %s106
    %s128 = sphi 0, %s130
    %s131 = sphi 0, %s128
    %s132 = sphi 0, %s131
    %s148 = sphi 0, %s132
    %s152 = sphi 0, %s152
    %s154 = sphi 0, %s152
    %s155 = sphi 0, %s154
    %s169 = sphi 0, %s155
    %s177 = sphi 0, %s179
    %s180 = sphi 0, %s177
    %s181 = sphi 0, %s180
    %s197 = sphi 0, %s181
  $region4: #{spp_forward.1} parent=0 // loop_header_branch
    %15 = sbr.rel (%p13) target = $region8
  $region5: #{spp_forward.1} parent=0 // loop_body
    %s17 = ssub.s32 %s12, 1
    %s18 = ssub.s32 %s12, 2
    %s25 = sadd.s32 1, %s20
    %p26 = scmp.ge.s32.totalorder %s25, 1
    %s27 = scalar_select %p26, 0, %s25
    %s28 = sadd.s32 1, %s19
    %s29 = scalar_select %p26, %s28, %s19
    %p30 = scmp.ge.s32.totalorder %s29, 2
    %s31 = scalar_select %p30, 0, %s29
    %s32 = ssub.s32 %s19, %s31
    %p33 = scmp.eq.s32.totalorder %s32, 0
    %s35 = sadd.s32 %s34, 1
    %s36 = scalar_select %p33, %s34, %s35
    %p39 = pneg %p33
    %p40 = scmp.eq.s32.totalorder %s12, 1
    %p41 = por %p39, %p40
    %p42 = scmp.ne.s32.totalorder %s34, %s37
    %p43 = scmp.eq.s32.totalorder %s12, 0
    %p44 = por %p42, %p43
    %p45 = scmp.ne.s32.totalorder %s34, %s37
    %p46 = scmp.eq.s32.totalorder %s17, 1
    %p47 = por %p45, %p46
    %p48 = scmp.ne.s32.totalorder %s37, %s38
    %p49 = scmp.eq.s32.totalorder %s17, 0
    %p50 = por %p48, %p49
    %p51 = scmp.ne.s32.totalorder %s37, %s38
    %p52 = scmp.eq.s32.totalorder %s18, 1
    %p53 = por %p51, %p52
    %p55 = scmp.ne.s32.totalorder %s38, %s54
    %p56 = scmp.eq.s32.totalorder %s18, 0
    %p57 = por %p55, %p56
    %s59 = sadd.s32 %s58, 1
    %p62 = scmp.eq.s32.totalorder %s12, 1
    %p63 = scmp.ne.s32.totalorder %s58, %s60
    %p64 = scmp.eq.s32.totalorder %s12, 0
    %p65 = por %p63, %p64
    %p66 = scmp.ne.s32.totalorder %s58, %s60
    %p67 = scmp.eq.s32.totalorder %s17, 1
    %p68 = por %p66, %p67
    %p69 = scmp.ne.s32.totalorder %s60, %s61
    %p70 = scmp.eq.s32.totalorder %s17, 0
    %p71 = por %p69, %p70
    %p72 = scmp.ne.s32.totalorder %s60, %s61
    %p73 = scmp.eq.s32.totalorder %s18, 1
    %p74 = por %p72, %p73
    %p76 = scmp.ne.s32.totalorder %s61, %s75
    %p77 = scmp.eq.s32.totalorder %s18, 0
    %p78 = por %p76, %p77
    %s80 = sadd.s32 %s79, 1
    %p83 = scmp.eq.s32.totalorder %s12, 1
    %p84 = scmp.ne.s32.totalorder %s79, %s81
    %p85 = scmp.eq.s32.totalorder %s12, 0
    %p86 = por %p84, %p85
    %p87 = scmp.ne.s32.totalorder %s79, %s81
    %p88 = scmp.eq.s32.totalorder %s17, 1
    %p89 = por %p87, %p88
    %p90 = scmp.ne.s32.totalorder %s81, %s82
    %p91 = scmp.eq.s32.totalorder %s17, 0
    %p92 = por %p90, %p91
    %p93 = scmp.ne.s32.totalorder %s81, %s82
    %p94 = scmp.eq.s32.totalorder %s18, 1
    %p95 = por %p93, %p94
    %p97 = scmp.ne.s32.totalorder %s82, %s96
    %p98 = scmp.eq.s32.totalorder %s18, 0
    %p99 = por %p97, %p98
    %s100 = ssub.s32 %s20, %s27
    %p101 = scmp.eq.s32.totalorder %s100, 0
    %s103 = sadd.s32 %s102, 1
    %s104 = scalar_select %p101, %s102, %s103
    %p107 = pneg %p101
    %p108 = scmp.eq.s32.totalorder %s12, 1
    %p109 = por %p107, %p108
    %p110 = scmp.ne.s32.totalorder %s102, %s105
    %p111 = scmp.eq.s32.totalorder %s12, 0
    %p112 = por %p110, %p111
    %p113 = scmp.ne.s32.totalorder %s102, %s105
    %p114 = scmp.eq.s32.totalorder %s17, 1
    %p115 = por %p113, %p114
    %p116 = scmp.ne.s32.totalorder %s105, %s106
    %p117 = scmp.eq.s32.totalorder %s17, 0
    %p118 = por %p116, %p117
    %p119 = scmp.ne.s32.totalorder %s105, %s106
    %p120 = scmp.eq.s32.totalorder %s18, 1
    %p121 = por %p119, %p120
    %p123 = scmp.ne.s32.totalorder %s106, %s122
    %p124 = scmp.eq.s32.totalorder %s18, 0
    %p125 = por %p123, %p124
    %s126 = ssub.s32 %s20, %s27
    %p127 = scmp.eq.s32.totalorder %s126, 0
    %s129 = sadd.s32 %s128, 1
    %s130 = scalar_select %p127, %s128, %s129
    %p133 = pneg %p127
    %p134 = scmp.eq.s32.totalorder %s12, 1
    %p135 = por %p133, %p134
    %p136 = scmp.ne.s32.totalorder %s128, %s131
    %p137 = scmp.eq.s32.totalorder %s12, 0
    %p138 = por %p136, %p137
    %p139 = scmp.ne.s32.totalorder %s128, %s131
    %p140 = scmp.eq.s32.totalorder %s17, 1
    %p141 = por %p139, %p140
    %p142 = scmp.ne.s32.totalorder %s131, %s132
    %p143 = scmp.eq.s32.totalorder %s17, 0
    %p144 = por %p142, %p143
    %p145 = scmp.ne.s32.totalorder %s131, %s132
    %p146 = scmp.eq.s32.totalorder %s18, 1
    %p147 = por %p145, %p146
    %p149 = scmp.ne.s32.totalorder %s132, %s148
    %p150 = scmp.eq.s32.totalorder %s18, 0
    %p151 = por %p149, %p150
    %s153 = sadd.s32 %s152, 1
    %p156 = scmp.eq.s32.totalorder %s12, 1
    %p157 = scmp.ne.s32.totalorder %s152, %s154
    %p158 = scmp.eq.s32.totalorder %s12, 0
    %p159 = por %p157, %p158
    %p160 = scmp.ne.s32.totalorder %s152, %s154
    %p161 = scmp.eq.s32.totalorder %s17, 1
    %p162 = por %p160, %p161
    %p163 = scmp.ne.s32.totalorder %s154, %s155
    %p164 = scmp.eq.s32.totalorder %s17, 0
    %p165 = por %p163, %p164
    %p166 = scmp.ne.s32.totalorder %s154, %s155
    %p167 = scmp.eq.s32.totalorder %s18, 1
    %p168 = por %p166, %p167
    %p170 = scmp.ne.s32.totalorder %s155, %s169
    %p171 = scmp.eq.s32.totalorder %s18, 0
    %p172 = por %p170, %p171
    %s173 = ssub.s32 %s19, %s31
    %s174 = ssub.s32 %s20, %s27
    %s175 = sor.u32 %s173, %s174
    %p176 = scmp.eq.s32.totalorder %s175, 0
    %s178 = sadd.s32 %s177, 1
    %s179 = scalar_select %p176, %s177, %s178
    %p182 = pneg %p176
    %p183 = scmp.eq.s32.totalorder %s12, 1
    %p184 = por %p182, %p183
    %p185 = scmp.ne.s32.totalorder %s177, %s180
    %p186 = scmp.eq.s32.totalorder %s12, 0
    %p187 = por %p185, %p186
    %p188 = scmp.ne.s32.totalorder %s177, %s180
    %p189 = scmp.eq.s32.totalorder %s17, 1
    %p190 = por %p188, %p189
    %p191 = scmp.ne.s32.totalorder %s180, %s181
    %p192 = scmp.eq.s32.totalorder %s17, 0
    %p193 = por %p191, %p192
    %p194 = scmp.ne.s32.totalorder %s180, %s181
    %p195 = scmp.eq.s32.totalorder %s18, 1
    %p196 = por %p194, %p195
    %p198 = scmp.ne.s32.totalorder %s181, %s197
    %p199 = scmp.eq.s32.totalorder %s18, 0
    %p200 = por %p198, %p199
    %p201 = scmp.le.s32.totalorder 1, %s12
    %p202 = scmp.lt.s32.totalorder %s12, 3
    %p203 = pnand %p201, %p202
    %p204 = pneg %p203
    // Predicated region
    $region9: #{spp_forward.1} parent=5 // pred_check
      _
    $region10: #{spp_forward.1} parent=5 // pred_check_branch
      %206 = sbr.rel (%p203) target = $region12
    $region11: #{spp_forward.1} parent=5 // pred_region
      %s207 = ssub.s32 %s12, 1
      // Predicated region
      $region13: #{spp_forward.1} parent=11 // pred_check
        %p208 = pneg %p71
      $region14: #{spp_forward.1} parent=11 // pred_check_branch
        %210 = sbr.rel (%p208) target = $region16
      $region15: #{spp_forward.1} parent=11 // pred_region
        _
      $region16: #{spp_forward.1} parent=11 // pred_fallthru
        _
      // Predicated region
      $region17: #{spp_forward.1} parent=11 // pred_check
        %p211 = pneg %p92
      $region18: #{spp_forward.1} parent=11 // pred_check_branch
        %213 = sbr.rel (%p211) target = $region20
      $region19: #{spp_forward.1} parent=11 // pred_region
        _
      $region20: #{spp_forward.1} parent=11 // pred_fallthru
        _
      // Predicated region
      $region21: #{spp_forward.1} parent=11 // pred_check
        %p214 = pneg %p118
      $region22: #{spp_forward.1} parent=11 // pred_check_branch
        %216 = sbr.rel (%p214) target = $region24
      $region23: #{spp_forward.1} parent=11 // pred_region
        %s217 = smul.u32 2, %s22
        %p218 = scmp.lt.s32.totalorder %s217, 1
        %s219 = scalar_select %p218, %s217, 1
        %s220 = smul.addr %s219, 4
        %s221 = scalar_lea.vmem %s3, %s220
        %s222 = smul.u32 2, %s22
      $region24: #{spp_forward.1} parent=11 // pred_fallthru
        _
      // Predicated region
      $region25: #{spp_forward.1} parent=11 // pred_check
        %p223 = pneg %p144
      $region26: #{spp_forward.1} parent=11 // pred_check_branch
        %225 = sbr.rel (%p223) target = $region28
      $region27: #{spp_forward.1} parent=11 // pred_region
        %s226 = smul.u32 2, %s22
        %p227 = scmp.lt.s32.totalorder %s226, 1
        %s228 = scalar_select %p227, %s226, 1
        %s229 = smul.addr %s228, 8
        %s230 = scalar_lea.vmem %s4, %s229
        %s231 = smul.u32 2, %s22
      $region28: #{spp_forward.1} parent=11 // pred_fallthru
        _
      // Predicated region
      $region29: #{spp_forward.1} parent=11 // pred_check
        %p232 = pneg %p165
      $region30: #{spp_forward.1} parent=11 // pred_check_branch
        %234 = sbr.rel (%p232) target = $region32
      $region31: #{spp_forward.1} parent=11 // pred_region
        _
      $region32: #{spp_forward.1} parent=11 // pred_fallthru
        _
    $region12: #{spp_forward.1} parent=5 // pred_fallthru
      _
    %p235 = scmp.lt.s32.totalorder %s12, 2
    // Predicated region
    $region33: #{spp_forward.1} parent=5 // pred_check
      %p236 = pneg %p235
    $region34: #{spp_forward.1} parent=5 // pred_check_branch
      %238 = sbr.rel (%p236) target = $region36
    $region35: #{spp_forward.1} parent=5 // pred_region
      // Predicated region
      $region37: #{spp_forward.1} parent=35 // pred_check
        %p239 = pneg %p44
      $region38: #{spp_forward.1} parent=35 // pred_check_branch
        %241 = sbr.rel (%p239) target = $region40
      $region39: #{spp_forward.1} parent=35 // pred_region
        %p242 = scmp.lt.s32.totalorder %s19, 1
        %s243 = scalar_select %p242, %s19, 1
        %s244 = smul.addr %s243, 4
        %s245 = smul.addr %s244, 4
        %s246 = scalar_lea.vmem %s0, %s245
      $region40: #{spp_forward.1} parent=35 // pred_fallthru
        _
    $region36: #{spp_forward.1} parent=5 // pred_fallthru
      _
    %p247 = scmp.le.s32.totalorder 1, %s12
    %p248 = scmp.lt.s32.totalorder %s12, 3
    %p249 = pnand %p247, %p248
    %p250 = pneg %p249
    // Predicated region
    $region41: #{spp_forward.1} parent=5 // pred_check
      _
    $region42: #{spp_forward.1} parent=5 // pred_check_branch
      %252 = sbr.rel (%p249) target = $region44
    $region43: #{spp_forward.1} parent=5 // pred_region
      %s253 = ssub.s32 %s12, 1
      %p254 = scmp.lt.s32.totalorder %s21, 1
      %s255 = scalar_select %p254, %s21, 1
      %s256 = smul.addr %s255, 4
      %s257 = smul.addr %s256, 4
      %s258 = scalar_lea.vmem %s0, %s257
      %p259 = pneg %p50
      %p260 = pneg %p47
      %p261 = pneg %p71
      %p262 = pneg %p68
      %p263 = pneg %p92
      %p264 = pneg %p89
      %s265 = smul.u32 2, %s22
      %p266 = scmp.lt.s32.totalorder %s265, 1
      %s267 = scalar_select %p266, %s265, 1
      %s268 = smul.addr %s267, 4
      %s269 = scalar_lea.vmem %s3, %s268
      %p270 = pneg %p118
      %p271 = pneg %p115
      %s272 = smul.u32 2, %s22
      %p273 = scmp.lt.s32.totalorder %s272, 1
      %s274 = scalar_select %p273, %s272, 1
      %s275 = smul.addr %s274, 8
      %s276 = scalar_lea.vmem %s4, %s275
      %p277 = pneg %p144
      %p278 = pneg %p141
      %p279 = pneg %p165
      %p280 = pneg %p162
      %p281 = pneg %p193
      %p282 = pneg %p190
      %s283 = smul.u32 2, %s22
      %p284 = scmp.lt.s32.totalorder %s21, 1
      %s285 = scalar_select %p284, %s21, 1
      %p286 = scmp.lt.s32.totalorder %s283, 1
      %s287 = scalar_select %p286, %s283, 1
      %s288 = smul.addr %s287, 2
      %s289 = smul.addr %s285, 4
      %s290 = sadd.s32 %s288, %s289
      %s291 = smul.addr %s290, 4
      %s292 = scalar_lea.vmem %s6, %s291
      %p293 = scmp.lt.s32.totalorder %s21, 1
      %s294 = scalar_select %p293, %s21, 1
      %s295 = smul.addr %s294, 4
      %s296 = smul.addr %s295, 4
      %s297 = scalar_lea.vmem %s0, %s296
      %s298 = smul.u32 2, %s22
      %p299 = scmp.lt.s32.totalorder %s298, 1
      %s300 = scalar_select %p299, %s298, 1
      %s301 = smul.addr %s300, 4
      %s302 = scalar_lea.vmem %s3, %s301
      %s303 = smul.u32 2, %s22
      %s304 = smul.u32 2, %s22
      %p305 = scmp.lt.s32.totalorder %s304, 1
      %s306 = scalar_select %p305, %s304, 1
      %s307 = smul.addr %s306, 8
      %s308 = scalar_lea.vmem %s4, %s307
      %s309 = smul.u32 2, %s22
      %s310 = smul.u32 2, %s22
      %p311 = scmp.lt.s32.totalorder %s21, 1
      %s312 = scalar_select %p311, %s21, 1
      %p313 = scmp.lt.s32.totalorder %s310, 1
      %s314 = scalar_select %p313, %s310, 1
      %s315 = smul.addr %s314, 2
      %s316 = smul.addr %s312, 4
      %s317 = sadd.s32 %s315, %s316
      %s318 = smul.addr %s317, 4
      %s319 = scalar_lea.vmem %s6, %s318
      %s320 = smul.u32 2, %s22
      %v322 = vld [vmem:[%s297] sm:$0xff]
      %v323 = vld [vmem:[%s297 + $0x8] sm:$0xff]
      %v324 = vld [vmem:[%s1] sm:$0xf]
      %v325 = vld [vmem:[%s2] sm:$0xff]
      %327 = vset.pattern.permute.xlu0 0
      %328 = vperm.xlu0 %327, %v325
      %v329 = vpop.permute.xlu0 %328
      %v333 = vunpack.c.l.b16 %v322
      %v334 = vunpack.c.h.b16 %v322
      %v335 = vunpack.c.l.b16 %v323
      %v336 = vunpack.c.h.b16 %v323
      %v337 = vpack.c.b16 %v335, %v333
      %v338 = vpack.c.b16 %v336, %v334
      %vm341 = vcmask 130048
      %v343 = vsel %vm341, %v324, 0
      %345 = vmatprep.subr.bf16.mxu0 %v338
      %346 = vmatpush1.bf16.msra.mxu0 %v337
      %347 = vmatprep.subr.bf16.mxu0 0
      %348 = vmatpush1.bf16.msra.mxu0 0
      %349 = vmatprep.subr.bf16.mxu0 0
      %350 = vmatpush1.bf16.msra.mxu0 0
      %351 = vmatprep.subr.bf16.mxu0 0
      %352 = vmatpush1.bf16.msra.mxu0 0
      %353 = vmatprep.subr.bf16.mxu0 0
      %354 = vmatpush1.bf16.msra.mxu0 0
      %355 = vmatprep.subr.bf16.mxu0 0
      %356 = vmatpush1.bf16.msra.mxu0 0
      %357 = vmatprep.subr.bf16.mxu0 0
      %358 = vmatpush1.bf16.msra.mxu0 0
      %359 = vmatprep.subr.bf16.mxu0 0
      %360 = vmatpush1.bf16.msra.mxu0 0
      %361 = vmatprep.subr.bf16.mxu0 0
      %362 = vmatpush1.bf16.msra.mxu0 0
      %363 = vmatprep.subr.bf16.mxu0 0
      %364 = vmatpush1.bf16.msra.mxu0 0
      %365 = vmatprep.subr.bf16.mxu0 0
      %366 = vmatpush1.bf16.msra.mxu0 0
      %367 = vmatprep.subr.bf16.mxu0 0
      %368 = vmatpush1.bf16.msra.mxu0 0
      %369 = vmatprep.subr.bf16.mxu0 0
      %370 = vmatpush1.bf16.msra.mxu0 0
      %371 = vmatprep.subr.bf16.mxu0 0
      %372 = vmatpush1.bf16.msra.mxu0 0
      %373 = vmatprep.subr.bf16.mxu0 0
      %374 = vmatpush1.bf16.msra.mxu0 0
      %375 = vmatprep.subr.bf16.mxu0 0
      %376 = vmatpush1.bf16.msra.mxu0 0
      %377 = vmatprep.mubr.bf16.mxu0 0
      %378 = vmatmul.mubr.bf16.gmra.mrb[0].mxu0 %v343
      %v379 = vpop.f32.mrb[0].mxu0
      %v380 = vadd.f32 %v329, %v379
      %v381 = vpop.f32.mrb[0].mxu0
      %v382 = vadd.f32 %v329, %v381
      %v383 = vpop.f32.mrb[0].mxu0
      %v384 = vpop.f32.mrb[0].mxu0
      %385 = vdwg.mxu0
      %v386 = vxor.u32 %v380, 2147483648
      %v387 = vxor.u32 %v382, 2147483648
      %v388 = vmul.f32 %v386, 1.442695
      %v389 = vpow.pop %v388
      %v390 = vmul.f32 %v387, 1.442695
      %v391 = vpow.pop %v390
      %v392 = vadd.f32 %v389, 1.0
      %v393 = vadd.f32 %v391, 1.0
      %v394 = vrcp.pop %v392
      %v395 = vmul.f32 1.0, %v394
      %v396 = vrcp.pop %v393
      %v397 = vmul.f32 1.0, %v396
      %v398 = vmul.f32 %v380, %v395
      %v399 = vmul.f32 %v382, %v397
      %v400 = vld [vmem:[%s5] sm:$0x3]
      %s401 = scalar_lea.vmem %s5, 2
      %v402 = vld [vmem:[%s401] sm:$0x3]
      %s403 = scalar_lea.vmem %s5, 4
      %v404 = vld [vmem:[%s403] sm:$0x3]
      %s405 = scalar_lea.vmem %s5, 6
      %v406 = vld [vmem:[%s405] sm:$0x3]
      %s407 = scalar_lea.vmem %s5, 8
      %v408 = vld [vmem:[%s407] sm:$0x3]
      %s409 = scalar_lea.vmem %s5, 10
      %v410 = vld [vmem:[%s409] sm:$0x3]
      %s411 = scalar_lea.vmem %s5, 12
      %v412 = vld [vmem:[%s411] sm:$0x3]
      %s413 = scalar_lea.vmem %s5, 14
      %v414 = vld [vmem:[%s413] sm:$0x3]
      %v415 = vld [vmem:[%s302] sm:$0xf]
      %v416 = vld [vmem:[%s302 + $0x4] sm:$0xf]
      %417 = vrot.lane.b32.xlu0 %v398, 127
      %v418 = vpop.permute.xlu0 %417
      %419 = vrot.lane.b32.xlu0 %v399, 127
      %v420 = vpop.permute.xlu0 %419
      %v421 = vlaneseq
      %v422 = vand.u32 %v421, 127
      %vm423 = vcmp.lt.s32.totalorder %v422, 127
      %v424 = vsel %vm423, %v418, %v420
      %v425 = vsel %vm423, %v420, %v418
      %v427 = vlaneseq
      %v428 = vshrl.u32 %v427, 7
      %v429 = vsub.s32 0, %v428
      %v430 = vrot.slane %v400, %v429
      %v431 = vlaneseq
      %v432 = vshrl.u32 %v431, 7
      %v433 = vsub.s32 1, %v432
      %v434 = vrot.slane %v400, %v433
      %v437 = vadd.f32 %v424, %v430
      %v438 = vadd.f32 %v425, %v434
      %v439 = vmax.f32 %v398, %v437
      %v440 = vmax.f32 %v399, %v438
      %441 = vrot.lane.b32.xlu0 %v398, 1
      %v442 = vpop.permute.xlu0 %441
      %443 = vrot.lane.b32.xlu0 %v399, 1
      %v444 = vpop.permute.xlu0 %443
      %vm445 = vcmp.lt.s32.totalorder %v422, 1
      %v446 = vsel %vm445, %v442, %v444
      %v447 = vsel %vm445, %v444, %v442
      %v449 = vlaneseq
      %v450 = vshrl.u32 %v449, 7
      %v451 = vsub.s32 0, %v450
      %v452 = vrot.slane %v402, %v451
      %v453 = vlaneseq
      %v454 = vshrl.u32 %v453, 7
      %v455 = vsub.s32 1, %v454
      %v456 = vrot.slane %v402, %v455
      %v459 = vadd.f32 %v447, %v452
      %v460 = vadd.f32 %v446, %v456
      %v461 = vmax.f32 %v439, %v459
      %v462 = vmax.f32 %v440, %v460
      %463 = vrot.lane.b32.xlu0 %v398, 126
      %v464 = vpop.permute.xlu0 %463
      %465 = vrot.lane.b32.xlu0 %v399, 126
      %v466 = vpop.permute.xlu0 %465
      %vm467 = vcmp.lt.s32.totalorder %v422, 126
      %v468 = vsel %vm467, %v464, %v466
      %v469 = vsel %vm467, %v466, %v464
      %v471 = vlaneseq
      %v472 = vshrl.u32 %v471, 7
      %v473 = vsub.s32 0, %v472
      %v474 = vrot.slane %v404, %v473
      %v475 = vlaneseq
      %v476 = vshrl.u32 %v475, 7
      %v477 = vsub.s32 1, %v476
      %v478 = vrot.slane %v404, %v477
      %v481 = vadd.f32 %v468, %v474
      %v482 = vadd.f32 %v469, %v478
      %v483 = vmax.f32 %v461, %v481
      %v484 = vmax.f32 %v462, %v482
      %485 = vrot.lane.b32.xlu0 %v398, 2
      %v486 = vpop.permute.xlu0 %485
      %487 = vrot.lane.b32.xlu0 %v399, 2
      %v488 = vpop.permute.xlu0 %487
      %vm489 = vcmp.lt.s32.totalorder %v422, 2
      %v490 = vsel %vm489, %v486, %v488
      %v491 = vsel %vm489, %v488, %v486
      %v493 = vlaneseq
      %v494 = vshrl.u32 %v493, 7
      %v495 = vsub.s32 0, %v494
      %v496 = vrot.slane %v406, %v495
      %v497 = vlaneseq
      %v498 = vshrl.u32 %v497, 7
      %v499 = vsub.s32 1, %v498
      %v500 = vrot.slane %v406, %v499
      %v503 = vadd.f32 %v491, %v496
      %v504 = vadd.f32 %v490, %v500
      %v505 = vmax.f32 %v483, %v503
      %v506 = vmax.f32 %v484, %v504
      %507 = vrot.lane.b32.xlu0 %v505, 112
      %v508 = vpop.permute.xlu0 %507
      %509 = vrot.lane.b32.xlu0 %v506, 112
      %v510 = vpop.permute.xlu0 %509
      %vm511 = vcmp.lt.s32.totalorder %v422, 112
      %v512 = vsel %vm511, %v508, %v510
      %v513 = vsel %vm511, %v510, %v508
      %v515 = vlaneseq
      %v516 = vshrl.u32 %v515, 7
      %v517 = vsub.s32 0, %v516
      %v518 = vrot.slane %v408, %v517
      %v519 = vlaneseq
      %v520 = vshrl.u32 %v519, 7
      %v521 = vsub.s32 1, %v520
      %v522 = vrot.slane %v408, %v521
      %v525 = vadd.f32 %v512, %v518
      %v526 = vadd.f32 %v513, %v522
      %v527 = vmax.f32 %v505, %v525
      %v528 = vmax.f32 %v506, %v526
      %529 = vrot.lane.b32.xlu0 %v505, 16
      %v530 = vpop.permute.xlu0 %529
      %531 = vrot.lane.b32.xlu0 %v506, 16
      %v532 = vpop.permute.xlu0 %531
      %vm533 = vcmp.lt.s32.totalorder %v422, 16
      %v534 = vsel %vm533, %v530, %v532
      %v535 = vsel %vm533, %v532, %v530
      %v537 = vlaneseq
      %v538 = vshrl.u32 %v537, 7
      %v539 = vsub.s32 0, %v538
      %v540 = vrot.slane %v410, %v539
      %v541 = vlaneseq
      %v542 = vshrl.u32 %v541, 7
      %v543 = vsub.s32 1, %v542
      %v544 = vrot.slane %v410, %v543
      %v547 = vadd.f32 %v535, %v540
      %v548 = vadd.f32 %v534, %v544
      %v549 = vmax.f32 %v527, %v547
      %v550 = vmax.f32 %v528, %v548
      %551 = vrot.lane.b32.xlu0 %v505, 96
      %v552 = vpop.permute.xlu0 %551
      %553 = vrot.lane.b32.xlu0 %v506, 96
      %v554 = vpop.permute.xlu0 %553
      %vm555 = vcmp.lt.s32.totalorder %v422, 96
      %v556 = vsel %vm555, %v552, %v554
      %v557 = vsel %vm555, %v554, %v552
      %v559 = vlaneseq
      %v560 = vshrl.u32 %v559, 7
      %v561 = vsub.s32 0, %v560
      %v562 = vrot.slane %v412, %v561
      %v563 = vlaneseq
      %v564 = vshrl.u32 %v563, 7
      %v565 = vsub.s32 1, %v564
      %v566 = vrot.slane %v412, %v565
      %v569 = vadd.f32 %v556, %v562
      %v570 = vadd.f32 %v557, %v566
      %v571 = vmax.f32 %v549, %v569
      %v572 = vmax.f32 %v550, %v570
      %573 = vrot.lane.b32.xlu0 %v505, 32
      %v574 = vpop.permute.xlu0 %573
      %575 = vrot.lane.b32.xlu0 %v506, 32
      %v576 = vpop.permute.xlu0 %575
      %vm577 = vcmp.lt.s32.totalorder %v422, 32
      %v578 = vsel %vm577, %v574, %v576
      %v579 = vsel %vm577, %v576, %v574
      %v581 = vlaneseq
      %v582 = vshrl.u32 %v581, 7
      %v583 = vsub.s32 0, %v582
      %v584 = vrot.slane %v414, %v583
      %v585 = vlaneseq
      %v586 = vshrl.u32 %v585, 7
      %v587 = vsub.s32 1, %v586
      %v588 = vrot.slane %v414, %v587
      %v591 = vadd.f32 %v579, %v584
      %v592 = vadd.f32 %v578, %v588
      %v593 = vmax.f32 %v571, %v591
      %v594 = vmax.f32 %v572, %v592
      %s595 = scalar_lea.vmem %s302, 8
      %v596 = vld [vmem:[%s595] sm:$0xf]
      %v597 = vld [vmem:[%s595 + $0x4] sm:$0xf]
      %v600 = vunpack.c.l.b16 %v596
      %v601 = vunpack.c.l.b16 %v597
      %v602 = vpack.c.b16 %v601, %v600
      %vm603 = vcmask 64512
      %v605 = vsel %vm603, %v602, 0
      %607 = vmatprep.subr.mxu0 %v594
      %608 = vmatpush1.msra.mxu0 %v593
      %609 = vmatprep.subr.mxu0 0.0
      %610 = vmatpush1.msra.mxu0 0.0
      %611 = vmatprep.subr.mxu0 0.0
      %612 = vmatpush1.msra.mxu0 0.0
      %613 = vmatprep.subr.mxu0 0.0
      %614 = vmatpush1.msra.mxu0 0.0
      %615 = vmatprep.subr.mxu0 0.0
      %616 = vmatpush1.msra.mxu0 0.0
      %617 = vmatprep.subr.mxu0 0.0
      %618 = vmatpush1.msra.mxu0 0.0
      %619 = vmatprep.subr.mxu0 0.0
      %620 = vmatpush1.msra.mxu0 0.0
      %621 = vmatprep.subr.mxu0 0.0
      %622 = vmatpush1.msra.mxu0 0.0
      %623 = vmatprep.subr.mxu0 0.0
      %624 = vmatpush1.msra.mxu0 0.0
      %625 = vmatprep.subr.mxu0 0.0
      %626 = vmatpush1.msra.mxu0 0.0
      %627 = vmatprep.subr.mxu0 0.0
      %628 = vmatpush1.msra.mxu0 0.0
      %629 = vmatprep.subr.mxu0 0.0
      %630 = vmatpush1.msra.mxu0 0.0
      %631 = vmatprep.subr.mxu0 0.0
      %632 = vmatpush1.msra.mxu0 0.0
      %633 = vmatprep.subr.mxu0 0.0
      %634 = vmatpush1.msra.mxu0 0.0
      %635 = vmatprep.subr.mxu0 0.0
      %636 = vmatpush1.msra.mxu0 0.0
      %637 = vmatprep.subr.mxu0 0.0
      %638 = vmatpush1.msra.mxu0 0.0
      %639 = vmatprep.subr.mxu0 0.0
      %640 = vmatpush1.msra.mxu0 0.0
      %641 = vmatprep.subr.mxu0 0.0
      %642 = vmatpush1.msra.mxu0 0.0
      %643 = vmatprep.subr.mxu0 0.0
      %644 = vmatpush1.msra.mxu0 0.0
      %645 = vmatprep.subr.mxu0 0.0
      %646 = vmatpush1.msra.mxu0 0.0
      %647 = vmatprep.subr.mxu0 0.0
      %648 = vmatpush1.msra.mxu0 0.0
      %649 = vmatprep.subr.mxu0 0.0
      %650 = vmatpush1.msra.mxu0 0.0
      %651 = vmatprep.subr.mxu0 0.0
      %652 = vmatpush1.msra.mxu0 0.0
      %653 = vmatprep.subr.mxu0 0.0
      %654 = vmatpush1.msra.mxu0 0.0
      %655 = vmatprep.subr.mxu0 0.0
      %656 = vmatpush1.msra.mxu0 0.0
      %657 = vmatprep.subr.mxu0 0.0
      %658 = vmatpush1.msra.mxu0 0.0
      %659 = vmatprep.subr.mxu0 0.0
      %660 = vmatpush1.msra.mxu0 0.0
      %661 = vmatprep.subr.mxu0 0.0
      %662 = vmatpush1.msra.mxu0 0.0
      %663 = vmatprep.subr.mxu0 0.0
      %664 = vmatpush1.msra.mxu0 0.0
      %665 = vmatprep.subr.mxu0 0.0
      %666 = vmatpush1.msra.mxu0 0.0
      %667 = vmatprep.subr.mxu0 0.0
      %668 = vmatpush1.msra.mxu0 0.0
      %669 = vmatprep.subr.mxu0 0.0
      %670 = vmatpush1.msra.mxu0 0.0
      %671 = vmatprep.mubr.bf16.mxu0 0
      %672 = vmatmul.mubr.bf16.gmra.mrb[0].mxu0 %v605
      %v673 = vpop.f32.mrb[0].mxu0
      %v674 = vadd.f32 0.0, %v673
      %v675 = vpop.f32.mrb[0].mxu0
      %v676 = vadd.f32 0.0, %v675
      %v677 = vpop.f32.mrb[0].mxu0
      %v678 = vadd.f32 0.0, %v677
      %v679 = vpop.f32.mrb[0].mxu0
      %v680 = vadd.f32 0.0, %v679
      %681 = vdwg.mxu0
      %v684 = vunpack.c.l.b16 %v415
      %v685 = vunpack.c.l.b16 %v416
      %v686 = vpack.c.b16 %v685, %v684
      %v688 = vsel %vm603, %v686, 0
      %690 = vmatprep.subr.mxu0 %v399
      %691 = vmatpush1.msra.mxu0 %v398
      %692 = vmatprep.subr.mxu0 0.0
      %693 = vmatpush1.msra.mxu0 0.0
      %694 = vmatprep.subr.mxu0 0.0
      %695 = vmatpush1.msra.mxu0 0.0
      %696 = vmatprep.subr.mxu0 0.0
      %697 = vmatpush1.msra.mxu0 0.0
      %698 = vmatprep.subr.mxu0 0.0
      %699 = vmatpush1.msra.mxu0 0.0
      %700 = vmatprep.subr.mxu0 0.0
      %701 = vmatpush1.msra.mxu0 0.0
      %702 = vmatprep.subr.mxu0 0.0
      %703 = vmatpush1.msra.mxu0 0.0
      %704 = vmatprep.subr.mxu0 0.0
      %705 = vmatpush1.msra.mxu0 0.0
      %706 = vmatprep.subr.mxu0 0.0
      %707 = vmatpush1.msra.mxu0 0.0
      %708 = vmatprep.subr.mxu0 0.0
      %709 = vmatpush1.msra.mxu0 0.0
      %710 = vmatprep.subr.mxu0 0.0
      %711 = vmatpush1.msra.mxu0 0.0
      %712 = vmatprep.subr.mxu0 0.0
      %713 = vmatpush1.msra.mxu0 0.0
      %714 = vmatprep.subr.mxu0 0.0
      %715 = vmatpush1.msra.mxu0 0.0
      %716 = vmatprep.subr.mxu0 0.0
      %717 = vmatpush1.msra.mxu0 0.0
      %718 = vmatprep.subr.mxu0 0.0
      %719 = vmatpush1.msra.mxu0 0.0
      %720 = vmatprep.subr.mxu0 0.0
      %721 = vmatpush1.msra.mxu0 0.0
      %722 = vmatprep.subr.mxu0 0.0
      %723 = vmatpush1.msra.mxu0 0.0
      %724 = vmatprep.subr.mxu0 0.0
      %725 = vmatpush1.msra.mxu0 0.0
      %726 = vmatprep.subr.mxu0 0.0
      %727 = vmatpush1.msra.mxu0 0.0
      %728 = vmatprep.subr.mxu0 0.0
      %729 = vmatpush1.msra.mxu0 0.0
      %730 = vmatprep.subr.mxu0 0.0
      %731 = vmatpush1.msra.mxu0 0.0
      %732 = vmatprep.subr.mxu0 0.0
      %733 = vmatpush1.msra.mxu0 0.0
      %734 = vmatprep.subr.mxu0 0.0
      %735 = vmatpush1.msra.mxu0 0.0
      %736 = vmatprep.subr.mxu0 0.0
      %737 = vmatpush1.msra.mxu0 0.0
      %738 = vmatprep.subr.mxu0 0.0
      %739 = vmatpush1.msra.mxu0 0.0
      %740 = vmatprep.subr.mxu0 0.0
      %741 = vmatpush1.msra.mxu0 0.0
      %742 = vmatprep.subr.mxu0 0.0
      %743 = vmatpush1.msra.mxu0 0.0
      %744 = vmatprep.subr.mxu0 0.0
      %745 = vmatpush1.msra.mxu0 0.0
      %746 = vmatprep.subr.mxu0 0.0
      %747 = vmatpush1.msra.mxu0 0.0
      %748 = vmatprep.subr.mxu0 0.0
      %749 = vmatpush1.msra.mxu0 0.0
      %750 = vmatprep.subr.mxu0 0.0
      %751 = vmatpush1.msra.mxu0 0.0
      %752 = vmatprep.subr.mxu0 0.0
      %753 = vmatpush1.msra.mxu0 0.0
      %754 = vmatprep.mubr.bf16.mxu0 0
      %755 = vmatmul.mubr.bf16.gmra.mrb[0].mxu0 %v688
      %v756 = vpop.f32.mrb[0].mxu0
      %v757 = vadd.f32 %v674, %v756
      %v758 = vpop.f32.mrb[0].mxu0
      %v759 = vadd.f32 %v676, %v758
      %v760 = vpop.f32.mrb[0].mxu0
      %v761 = vadd.f32 %v678, %v760
      %v762 = vpop.f32.mrb[0].mxu0
      %v763 = vadd.f32 %v680, %v762
      %764 = vdwg.mxu0
      %765 = vrot.lane.b32.xlu0 %v593, 127
      %v766 = vpop.permute.xlu0 %765
      %767 = vrot.lane.b32.xlu0 %v594, 127
      %v768 = vpop.permute.xlu0 %767
      %v769 = vsel %vm423, %v766, %v768
      %v770 = vsel %vm423, %v768, %v766
      %v771 = vadd.f32 %v769, %v430
      %v772 = vadd.f32 %v770, %v434
      %v773 = vmax.f32 %v593, %v771
      %v774 = vmax.f32 %v594, %v772
      %775 = vrot.lane.b32.xlu0 %v593, 1
      %v776 = vpop.permute.xlu0 %775
      %777 = vrot.lane.b32.xlu0 %v594, 1
      %v778 = vpop.permute.xlu0 %777
      %v779 = vsel %vm445, %v776, %v778
      %v780 = vsel %vm445, %v778, %v776
      %v781 = vadd.f32 %v780, %v452
      %v782 = vadd.f32 %v779, %v456
      %v783 = vmax.f32 %v773, %v781
      %v784 = vmax.f32 %v774, %v782
      %785 = vrot.lane.b32.xlu0 %v593, 126
      %v786 = vpop.permute.xlu0 %785
      %787 = vrot.lane.b32.xlu0 %v594, 126
      %v788 = vpop.permute.xlu0 %787
      %v789 = vsel %vm467, %v786, %v788
      %v790 = vsel %vm467, %v788, %v786
      %v791 = vadd.f32 %v789, %v474
      %v792 = vadd.f32 %v790, %v478
      %v793 = vmax.f32 %v783, %v791
      %v794 = vmax.f32 %v784, %v792
      %795 = vrot.lane.b32.xlu0 %v593, 2
      %v796 = vpop.permute.xlu0 %795
      %797 = vrot.lane.b32.xlu0 %v594, 2
      %v798 = vpop.permute.xlu0 %797
      %v799 = vsel %vm489, %v796, %v798
      %v800 = vsel %vm489, %v798, %v796
      %v801 = vadd.f32 %v800, %v496
      %v802 = vadd.f32 %v799, %v500
      %v803 = vmax.f32 %v793, %v801
      %v804 = vmax.f32 %v794, %v802
      %805 = vrot.lane.b32.xlu0 %v803, 112
      %v806 = vpop.permute.xlu0 %805
      %807 = vrot.lane.b32.xlu0 %v804, 112
      %v808 = vpop.permute.xlu0 %807
      %v809 = vsel %vm511, %v806, %v808
      %v810 = vsel %vm511, %v808, %v806
      %v811 = vadd.f32 %v809, %v518
      %v812 = vadd.f32 %v810, %v522
      %v813 = vmax.f32 %v803, %v811
      %v814 = vmax.f32 %v804, %v812
      %815 = vrot.lane.b32.xlu0 %v803, 16
      %v816 = vpop.permute.xlu0 %815
      %817 = vrot.lane.b32.xlu0 %v804, 16
      %v818 = vpop.permute.xlu0 %817
      %v819 = vsel %vm533, %v816, %v818
      %v820 = vsel %vm533, %v818, %v816
      %v821 = vadd.f32 %v820, %v540
      %v822 = vadd.f32 %v819, %v544
      %v823 = vmax.f32 %v813, %v821
      %v824 = vmax.f32 %v814, %v822
      %825 = vrot.lane.b32.xlu0 %v803, 96
      %v826 = vpop.permute.xlu0 %825
      %827 = vrot.lane.b32.xlu0 %v804, 96
      %v828 = vpop.permute.xlu0 %827
      %v829 = vsel %vm555, %v826, %v828
      %v830 = vsel %vm555, %v828, %v826
      %v831 = vadd.f32 %v829, %v562
      %v832 = vadd.f32 %v830, %v566
      %v833 = vmax.f32 %v823, %v831
      %v834 = vmax.f32 %v824, %v832
      %835 = vrot.lane.b32.xlu0 %v803, 32
      %v836 = vpop.permute.xlu0 %835
      %837 = vrot.lane.b32.xlu0 %v804, 32
      %v838 = vpop.permute.xlu0 %837
      %v839 = vsel %vm577, %v836, %v838
      %v840 = vsel %vm577, %v838, %v836
      %v841 = vadd.f32 %v840, %v584
      %v842 = vadd.f32 %v839, %v588
      %v843 = vmax.f32 %v833, %v841
      %v844 = vmax.f32 %v834, %v842
      %s845 = scalar_lea.vmem %s302, 16
      %v846 = vld [vmem:[%s845] sm:$0xf]
      %v847 = vld [vmem:[%s845 + $0x4] sm:$0xf]
      %v850 = vunpack.c.l.b16 %v846
      %v851 = vunpack.c.l.b16 %v847
      %v852 = vpack.c.b16 %v851, %v850
      %v854 = vsel %vm603, %v852, 0
      %856 = vmatprep.subr.mxu0 %v844
      %857 = vmatpush1.msra.mxu0 %v843
      %858 = vmatprep.subr.mxu0 0.0
      %859 = vmatpush1.msra.mxu0 0.0
      %860 = vmatprep.subr.mxu0 0.0
      %861 = vmatpush1.msra.mxu0 0.0
      %862 = vmatprep.subr.mxu0 0.0
      %863 = vmatpush1.msra.mxu0 0.0
      %864 = vmatprep.subr.mxu0 0.0
      %865 = vmatpush1.msra.mxu0 0.0
      %866 = vmatprep.subr.mxu0 0.0
      %867 = vmatpush1.msra.mxu0 0.0
      %868 = vmatprep.subr.mxu0 0.0
      %869 = vmatpush1.msra.mxu0 0.0
      %870 = vmatprep.subr.mxu0 0.0
      %871 = vmatpush1.msra.mxu0 0.0
      %872 = vmatprep.subr.mxu0 0.0
      %873 = vmatpush1.msra.mxu0 0.0
      %874 = vmatprep.subr.mxu0 0.0
      %875 = vmatpush1.msra.mxu0 0.0
      %876 = vmatprep.subr.mxu0 0.0
      %877 = vmatpush1.msra.mxu0 0.0
      %878 = vmatprep.subr.mxu0 0.0
      %879 = vmatpush1.msra.mxu0 0.0
      %880 = vmatprep.subr.mxu0 0.0
      %881 = vmatpush1.msra.mxu0 0.0
      %882 = vmatprep.subr.mxu0 0.0
      %883 = vmatpush1.msra.mxu0 0.0
      %884 = vmatprep.subr.mxu0 0.0
      %885 = vmatpush1.msra.mxu0 0.0
      %886 = vmatprep.subr.mxu0 0.0
      %887 = vmatpush1.msra.mxu0 0.0
      %888 = vmatprep.subr.mxu0 0.0
      %889 = vmatpush1.msra.mxu0 0.0
      %890 = vmatprep.subr.mxu0 0.0
      %891 = vmatpush1.msra.mxu0 0.0
      %892 = vmatprep.subr.mxu0 0.0
      %893 = vmatpush1.msra.mxu0 0.0
      %894 = vmatprep.subr.mxu0 0.0
      %895 = vmatpush1.msra.mxu0 0.0
      %896 = vmatprep.subr.mxu0 0.0
      %897 = vmatpush1.msra.mxu0 0.0
      %898 = vmatprep.subr.mxu0 0.0
      %899 = vmatpush1.msra.mxu0 0.0
      %900 = vmatprep.subr.mxu0 0.0
      %901 = vmatpush1.msra.mxu0 0.0
      %902 = vmatprep.subr.mxu0 0.0
      %903 = vmatpush1.msra.mxu0 0.0
      %904 = vmatprep.subr.mxu0 0.0
      %905 = vmatpush1.msra.mxu0 0.0
      %906 = vmatprep.subr.mxu0 0.0
      %907 = vmatpush1.msra.mxu0 0.0
      %908 = vmatprep.subr.mxu0 0.0
      %909 = vmatpush1.msra.mxu0 0.0
      %910 = vmatprep.subr.mxu0 0.0
      %911 = vmatpush1.msra.mxu0 0.0
      %912 = vmatprep.subr.mxu0 0.0
      %913 = vmatpush1.msra.mxu0 0.0
      %914 = vmatprep.subr.mxu0 0.0
      %915 = vmatpush1.msra.mxu0 0.0
      %916 = vmatprep.subr.mxu0 0.0
      %917 = vmatpush1.msra.mxu0 0.0
      %918 = vmatprep.subr.mxu0 0.0
      %919 = vmatpush1.msra.mxu0 0.0
      %920 = vmatprep.mubr.bf16.mxu0 0
      %921 = vmatmul.mubr.bf16.gmra.mrb[0].mxu0 %v854
      %v922 = vpop.f32.mrb[0].mxu0
      %v923 = vadd.f32 0.0, %v922
      %v924 = vpop.f32.mrb[0].mxu0
      %v925 = vadd.f32 0.0, %v924
      %v926 = vpop.f32.mrb[0].mxu0
      %v927 = vadd.f32 0.0, %v926
      %v928 = vpop.f32.mrb[0].mxu0
      %v929 = vadd.f32 0.0, %v928
      %930 = vdwg.mxu0
      %v931 = vadd.f32 %v757, %v923
      %v932 = vadd.f32 %v759, %v925
      %v933 = vadd.f32 %v761, %v927
      %v934 = vadd.f32 %v763, %v929
      %935 = vrot.lane.b32.xlu0 %v843, 127
      %v936 = vpop.permute.xlu0 %935
      %937 = vrot.lane.b32.xlu0 %v844, 127
      %v938 = vpop.permute.xlu0 %937
      %v939 = vsel %vm423, %v936, %v938
      %v940 = vsel %vm423, %v938, %v936
      %v941 = vadd.f32 %v939, %v430
      %v942 = vadd.f32 %v940, %v434
      %v943 = vmax.f32 %v843, %v941
      %v944 = vmax.f32 %v844, %v942
      %945 = vrot.lane.b32.xlu0 %v843, 1
      %v946 = vpop.permute.xlu0 %945
      %947 = vrot.lane.b32.xlu0 %v844, 1
      %v948 = vpop.permute.xlu0 %947
      %v949 = vsel %vm445, %v946, %v948
      %v950 = vsel %vm445, %v948, %v946
      %v951 = vadd.f32 %v950, %v452
      %v952 = vadd.f32 %v949, %v456
      %v953 = vmax.f32 %v943, %v951
      %v954 = vmax.f32 %v944, %v952
      %955 = vrot.lane.b32.xlu0 %v843, 126
      %v956 = vpop.permute.xlu0 %955
      %957 = vrot.lane.b32.xlu0 %v844, 126
      %v958 = vpop.permute.xlu0 %957
      %v959 = vsel %vm467, %v956, %v958
      %v960 = vsel %vm467, %v958, %v956
      %v961 = vadd.f32 %v959, %v474
      %v962 = vadd.f32 %v960, %v478
      %v963 = vmax.f32 %v953, %v961
      %v964 = vmax.f32 %v954, %v962
      %965 = vrot.lane.b32.xlu0 %v843, 2
      %v966 = vpop.permute.xlu0 %965
      %967 = vrot.lane.b32.xlu0 %v844, 2
      %v968 = vpop.permute.xlu0 %967
      %v969 = vsel %vm489, %v966, %v968
      %v970 = vsel %vm489, %v968, %v966
      %v971 = vadd.f32 %v970, %v496
      %v972 = vadd.f32 %v969, %v500
      %v973 = vmax.f32 %v963, %v971
      %v974 = vmax.f32 %v964, %v972
      %975 = vrot.lane.b32.xlu0 %v973, 112
      %v976 = vpop.permute.xlu0 %975
      %977 = vrot.lane.b32.xlu0 %v974, 112
      %v978 = vpop.permute.xlu0 %977
      %v979 = vsel %vm511, %v976, %v978
      %v980 = vsel %vm511, %v978, %v976
      %v981 = vadd.f32 %v979, %v518
      %v982 = vadd.f32 %v980, %v522
      %v983 = vmax.f32 %v973, %v981
      %v984 = vmax.f32 %v974, %v982
      %985 = vrot.lane.b32.xlu0 %v973, 16
      %v986 = vpop.permute.xlu0 %985
      %987 = vrot.lane.b32.xlu0 %v974, 16
      %v988 = vpop.permute.xlu0 %987
      %v989 = vsel %vm533, %v986, %v988
      %v990 = vsel %vm533, %v988, %v986
      %v991 = vadd.f32 %v990, %v540
      %v992 = vadd.f32 %v989, %v544
      %v993 = vmax.f32 %v983, %v991
      %v994 = vmax.f32 %v984, %v992
      %995 = vrot.lane.b32.xlu0 %v973, 96
      %v996 = vpop.permute.xlu0 %995
      %997 = vrot.lane.b32.xlu0 %v974, 96
      %v998 = vpop.permute.xlu0 %997
      %v999 = vsel %vm555, %v996, %v998
      %v1000 = vsel %vm555, %v998, %v996
      %v1001 = vadd.f32 %v999, %v562
      %v1002 = vadd.f32 %v1000, %v566
      %v1003 = vmax.f32 %v993, %v1001
      %v1004 = vmax.f32 %v994, %v1002
      %1005 = vrot.lane.b32.xlu0 %v973, 32
      %v1006 = vpop.permute.xlu0 %1005
      %1007 = vrot.lane.b32.xlu0 %v974, 32
      %v1008 = vpop.permute.xlu0 %1007
      %v1009 = vsel %vm577, %v1006, %v1008
      %v1010 = vsel %vm577, %v1008, %v1006
      %v1011 = vadd.f32 %v1010, %v584
      %v1012 = vadd.f32 %v1009, %v588
      %v1013 = vmax.f32 %v1003, %v1011
      %v1014 = vmax.f32 %v1004, %v1012
      %s1015 = scalar_lea.vmem %s302, 24
      %v1016 = vld [vmem:[%s1015] sm:$0xf]
      %v1017 = vld [vmem:[%s1015 + $0x4] sm:$0xf]
      %v1020 = vunpack.c.l.b16 %v1016
      %v1021 = vunpack.c.l.b16 %v1017
      %v1022 = vpack.c.b16 %v1021, %v1020
      %v1024 = vsel %vm603, %v1022, 0
      %1026 = vmatprep.subr.mxu0 %v1014
      %1027 = vmatpush1.msra.mxu0 %v1013
      %1028 = vmatprep.subr.mxu0 0.0
      %1029 = vmatpush1.msra.mxu0 0.0
      %1030 = vmatprep.subr.mxu0 0.0
      %1031 = vmatpush1.msra.mxu0 0.0
      %1032 = vmatprep.subr.mxu0 0.0
      %1033 = vmatpush1.msra.mxu0 0.0
      %1034 = vmatprep.subr.mxu0 0.0
      %1035 = vmatpush1.msra.mxu0 0.0
      %1036 = vmatprep.subr.mxu0 0.0
      %1037 = vmatpush1.msra.mxu0 0.0
      %1038 = vmatprep.subr.mxu0 0.0
      %1039 = vmatpush1.msra.mxu0 0.0
      %1040 = vmatprep.subr.mxu0 0.0
      %1041 = vmatpush1.msra.mxu0 0.0
      %1042 = vmatprep.subr.mxu0 0.0
      %1043 = vmatpush1.msra.mxu0 0.0
      %1044 = vmatprep.subr.mxu0 0.0
      %1045 = vmatpush1.msra.mxu0 0.0
      %1046 = vmatprep.subr.mxu0 0.0
      %1047 = vmatpush1.msra.mxu0 0.0
      %1048 = vmatprep.subr.mxu0 0.0
      %1049 = vmatpush1.msra.mxu0 0.0
      %1050 = vmatprep.subr.mxu0 0.0
      %1051 = vmatpush1.msra.mxu0 0.0
      %1052 = vmatprep.subr.mxu0 0.0
      %1053 = vmatpush1.msra.mxu0 0.0
      %1054 = vmatprep.subr.mxu0 0.0
      %1055 = vmatpush1.msra.mxu0 0.0
      %1056 = vmatprep.subr.mxu0 0.0
      %1057 = vmatpush1.msra.mxu0 0.0
      %1058 = vmatprep.subr.mxu0 0.0
      %1059 = vmatpush1.msra.mxu0 0.0
      %1060 = vmatprep.subr.mxu0 0.0
      %1061 = vmatpush1.msra.mxu0 0.0
      %1062 = vmatprep.subr.mxu0 0.0
      %1063 = vmatpush1.msra.mxu0 0.0
      %1064 = vmatprep.subr.mxu0 0.0
      %1065 = vmatpush1.msra.mxu0 0.0
      %1066 = vmatprep.subr.mxu0 0.0
      %1067 = vmatpush1.msra.mxu0 0.0
      %1068 = vmatprep.subr.mxu0 0.0
      %1069 = vmatpush1.msra.mxu0 0.0
      %1070 = vmatprep.subr.mxu0 0.0
      %1071 = vmatpush1.msra.mxu0 0.0
      %1072 = vmatprep.subr.mxu0 0.0
      %1073 = vmatpush1.msra.mxu0 0.0
      %1074 = vmatprep.subr.mxu0 0.0
      %1075 = vmatpush1.msra.mxu0 0.0
      %1076 = vmatprep.subr.mxu0 0.0
      %1077 = vmatpush1.msra.mxu0 0.0
      %1078 = vmatprep.subr.mxu0 0.0
      %1079 = vmatpush1.msra.mxu0 0.0
      %1080 = vmatprep.subr.mxu0 0.0
      %1081 = vmatpush1.msra.mxu0 0.0
      %1082 = vmatprep.subr.mxu0 0.0
      %1083 = vmatpush1.msra.mxu0 0.0
      %1084 = vmatprep.subr.mxu0 0.0
      %1085 = vmatpush1.msra.mxu0 0.0
      %1086 = vmatprep.subr.mxu0 0.0
      %1087 = vmatpush1.msra.mxu0 0.0
      %1088 = vmatprep.subr.mxu0 0.0
      %1089 = vmatpush1.msra.mxu0 0.0
      %1090 = vmatprep.mubr.bf16.mxu0 0
      %1091 = vmatmul.mubr.bf16.gmra.mrb[0].mxu0 %v1024
      %v1092 = vpop.f32.mrb[0].mxu0
      %v1093 = vadd.f32 0.0, %v1092
      %v1094 = vpop.f32.mrb[0].mxu0
      %v1095 = vadd.f32 0.0, %v1094
      %v1096 = vpop.f32.mrb[0].mxu0
      %v1097 = vadd.f32 0.0, %v1096
      %v1098 = vpop.f32.mrb[0].mxu0
      %v1099 = vadd.f32 0.0, %v1098
      %1100 = vdwg.mxu0
      %v1101 = vadd.f32 %v931, %v1093
      %v1102 = vadd.f32 %v932, %v1095
      %v1103 = vadd.f32 %v933, %v1097
      %v1104 = vadd.f32 %v934, %v1099
      %v1105 = vld [vmem:[%s308] sm:$0xff]
      %v1106 = vld [vmem:[%s308 + $0x8] sm:$0xff]
      %1108 = vset.pattern.permute.xlu0 0
      %1109 = vperm.xlu0 %1108, %v1105
      %v1110 = vpop.permute.xlu0 %1109
      %1113 = vset.pattern.permute.xlu0 0
      %1114 = vperm.xlu0 %1113, %v1106
      %v1115 = vpop.permute.xlu0 %1114
      %v1117 = vadd.f32 %v1101, %v1110
      %v1118 = vadd.f32 %v1102, %v1110
      %v1119 = vadd.f32 %v1103, %v1115
      %v1120 = vadd.f32 %v1104, %v1115
      %v1121 = vxor.u32 %v1117, 2147483648
      %v1122 = vxor.u32 %v1118, 2147483648
      %v1123 = vxor.u32 %v1119, 2147483648
      %v1124 = vxor.u32 %v1120, 2147483648
      %v1125 = vmul.f32 %v1121, 1.442695
      %v1126 = vpow.pop %v1125
      %v1127 = vmul.f32 %v1122, 1.442695
      %v1128 = vpow.pop %v1127
      %v1129 = vmul.f32 %v1123, 1.442695
      %v1130 = vpow.pop %v1129
      %v1131 = vmul.f32 %v1124, 1.442695
      %v1132 = vpow.pop %v1131
      %v1133 = vadd.f32 %v1126, 1.0
      %v1134 = vadd.f32 %v1128, 1.0
      %v1135 = vadd.f32 %v1130, 1.0
      %v1136 = vadd.f32 %v1132, 1.0
      %v1137 = vrcp.pop %v1133
      %v1138 = vmul.f32 1.0, %v1137
      %v1139 = vrcp.pop %v1134
      %v1140 = vmul.f32 1.0, %v1139
      %v1141 = vrcp.pop %v1135
      %v1142 = vmul.f32 1.0, %v1141
      %v1143 = vrcp.pop %v1136
      %v1144 = vmul.f32 1.0, %v1143
      %v1145 = vmul.f32 %v1117, %v1138
      %v1146 = vmul.f32 %v1118, %v1140
      %v1147 = vmul.f32 %v1119, %v1142
      %v1148 = vmul.f32 %v1120, %v1144
      %v1149 = vpack.c.bf16 %v1147, %v1145
      %v1150 = vpack.c.bf16 %v1148, %v1146
      %v1153 = vunpack.c.l.b16 %v1149
      %v1154 = vunpack.c.l.b16 %v1150
      %v1155 = vunpack.c.h.b16 %v1149
      %v1156 = vunpack.c.h.b16 %v1150
      %v1157 = vpack.c.b16 %v1154, %v1153
      %v1158 = vpack.c.b16 %v1156, %v1155
      %1161 = vst [vmem:[%s319] sm:$0xff] %v1157
      %1162 = vst [vmem:[%s319 + $0x8] sm:$0xff] %v1158
      %s1163 = smul.u32 2, %s22
      %p1164 = scmp.lt.s32.totalorder %s21, 1
      %s1165 = scalar_select %p1164, %s21, 1
      %p1166 = scmp.lt.s32.totalorder %s1163, 1
      %s1167 = scalar_select %p1166, %s1163, 1
      %s1168 = smul.addr %s1167, 2
      %s1169 = smul.addr %s1165, 4
      %s1170 = sadd.s32 %s1168, %s1169
      %s1171 = smul.addr %s1170, 4
      %s1172 = scalar_lea.vmem %s6, %s1171
      // Predicated region
      $region45: #{spp_forward.1} parent=43 // pred_check
        %p1173 = pneg %p190
      $region46: #{spp_forward.1} parent=43 // pred_check_branch
        %1175 = sbr.rel (%p1173) target = $region48
      $region47: #{spp_forward.1} parent=43 // pred_region
        %s1176 = smul.u32 2, %s22
      $region48: #{spp_forward.1} parent=43 // pred_fallthru
        _
    $region44: #{spp_forward.1} parent=5 // pred_fallthru
      _
    %p1177 = scmp.le.s32.totalorder 2, %s12
    // Predicated region
    $region49: #{spp_forward.1} parent=5 // pred_check
      %p1178 = pneg %p1177
    $region50: #{spp_forward.1} parent=5 // pred_check_branch
      %1180 = sbr.rel (%p1178) target = $region52
    $region51: #{spp_forward.1} parent=5 // pred_region
      %s1181 = ssub.s32 %s12, 2
      // Predicated region
      $region53: #{spp_forward.1} parent=51 // pred_check
        %p1182 = pneg %p196
      $region54: #{spp_forward.1} parent=51 // pred_check_branch
        %1184 = sbr.rel (%p1182) target = $region56
      $region55: #{spp_forward.1} parent=51 // pred_region
        %s1185 = smul.u32 2, %s24
        %p1186 = scmp.lt.s32.totalorder %s23, 1
        %s1187 = scalar_select %p1186, %s23, 1
        %p1188 = scmp.lt.s32.totalorder %s1185, 1
        %s1189 = scalar_select %p1188, %s1185, 1
        %s1190 = smul.addr %s1189, 2
        %s1191 = smul.addr %s1187, 4
        %s1192 = sadd.s32 %s1190, %s1191
        %s1193 = smul.addr %s1192, 4
        %s1194 = scalar_lea.vmem %s6, %s1193
      $region56: #{spp_forward.1} parent=51 // pred_fallthru
        _
    $region52: #{spp_forward.1} parent=5 // pred_fallthru
      _
  $region6: #{spp_forward.1} parent=0 // loop_footer
    %s16 = sadd.s32 1, %s12
  $region7: #{spp_forward.1} parent=0 // loop_footer_branch
    %11 = sbr.rel target = $region3
  $region8: #{spp_forward.1} parent=0 // loop_exit
    _

</llo_original>
